<compile_context>
chip_gen: v7x
topology: tpu7x:2x2x1
jax: 0.10.0
libtpu: 0.0.40
codegen_flags: <defaults>
</compile_context>

<pallas_src>
import functools

import jax
import jax.numpy as jnp
import numpy as np
from jax import lax
from jax.experimental import pallas as pl
from jax.experimental.pallas import tpu as pltpu


def encoder_rnn_kernel(
    ids_ref,     # (seq,)    int32  SMEM   token ids
    emb_ref,     # (V, I)    f32    VMEM   embedding table (small -> VMEM resident)
    wih_ref,     # (2I, 8H)  f32    VMEM   fused input->gate weights (block structured)
    whh_ref,     # (2H, 8H)  f32    VMEM   fused hidden->gate weights (block diagonal)
    b_ref,       # (1, 8H)   f32    VMEM   fused gate bias (b_ih + b_hh, both directions)
    wh_ref,      # (2H, H)   f32    VMEM   linearWh weight (transposed)
    bh_ref,      # (1, H)    f32    VMEM
    wc_ref,      # (2H, H)   f32    VMEM   linearWc weight (transposed + dir-permuted)
    bc_ref,      # (1, H)    f32    VMEM
    out_ref,     # (seq, 2H) f32    fused output: [:, :H] fwd hiddens, [:, H:] rev hiddens
    hn_ref,      # (1, H)    f32
    cn_ref,      # (1, H)    f32
    x2_vmem,     # (seq, 2I) f32 scratch: [fwd-order rows | reverse-order rows]
    xg_vmem,     # (seq, 8H) f32 scratch: per-step fused gate pre-activations
):
    seq, H2 = out_ref.shape
    H = H2 // 2
    I = emb_ref.shape[1]

    # ---- 1. embedding gather: read each token row ONCE from the VMEM table ------------
    # (no HBM DMAs; the row is written into both the fwd-order and reverse-order halves)
    def gather_body(t, carry):
        tok = ids_ref[t]
        row = emb_ref[pl.ds(tok, 1), :]                       # (1, I) dynamic-slice read
        x2_vmem[pl.ds(t, 1), pl.ds(0, I)] = row               # fwd chain input at step t
        x2_vmem[pl.ds(seq - 1 - t, 1), pl.ds(I, I)] = row     # rev chain input at step seq-1-t
        return carry

    lax.fori_loop(0, seq, gather_body, 0, unroll=True)

    # ---- 2. one fused input projection for all timesteps and both directions ----------
    # gate-column layout (activation grouped): [i_f,i_r | f_f,f_r | o_f,o_r | g_f,g_r]
    xg_vmem[...] = (jnp.dot(x2_vmem[...], wih_ref[...],
                            preferred_element_type=jnp.float32)
                    + b_ref[...])                                          # (seq, 8H)

    def _sigmoid(x):   # tanh-based logistic: exact, EUP only, no divide on the VALU path
        return 0.5 * (jnp.tanh(0.5 * x) + 1.0)

    # ---- 3. fused bidirectional recurrence: one small MXU step per timestep -----------
    def step(s, carry):
        h_cat, c_cat = carry                                               # (1, 2H) each
        # whh_ref indexed here on purpose (review: don't hold 16 vregs across the unroll)
        gates = xg_vmem[pl.ds(s, 1), :] + jnp.dot(
            h_cat, whh_ref[...], preferred_element_type=jnp.float32)       # (1, 8H)
        sig = _sigmoid(gates[:, :6 * H])      # i, f, o gates -> sigmoid (first 6H lanes)
        g_g = jnp.tanh(gates[:, 6 * H:])      # g gate        -> tanh     (last 2H lanes)
        i_g = sig[:, 0 * H2:1 * H2]
        f_g = sig[:, 1 * H2:2 * H2]
        o_g = sig[:, 2 * H2:3 * H2]
        c_new = f_g * c_cat + i_g * g_g
        h_new = o_g * jnp.tanh(c_new)
        # fwd half is h_f(t=s); rev half is the reverse chain's output at time seq-1-s.
        out_ref[pl.ds(s, 1), pl.ds(0, H)] = h_new[:, :H]
        out_ref[pl.ds(seq - 1 - s, 1), pl.ds(H, H)] = h_new[:, H:]
        return h_new, c_new

    h0 = jnp.zeros((1, H2), jnp.float32)
    c0 = jnp.zeros((1, H2), jnp.float32)
    _, c_cat = lax.fori_loop(0, seq, step, (h0, c0), unroll=True)

    # ---- 4. heads ----------------------------------------------------------------------
    # output[-1] = [h_f(T-1), h_r(T-1)]; both halves already live in out_ref[seq-1, :]
    # (fwd written at fused step seq-1, rev written at fused step 0).
    last_out = out_ref[pl.ds(seq - 1, 1), :]                               # (1, 2H)
    hn_ref[...] = jnp.dot(last_out, wh_ref[...],
                          preferred_element_type=jnp.float32) + bh_ref[...]
    # c_n = linearWc(cat(c_r_final, c_f_final)); wc_ref is pre-permuted in the packer so
    # the natural [c_f, c_r] register layout feeds it directly (no in-kernel swap).
    cn_ref[...] = jnp.dot(c_cat, wc_ref[...],
                          preferred_element_type=jnp.float32) + bc_ref[...]


def pack_encoder_params(params, hidden_size):
    """One-time repack of PyTorch-layout weights into the fused kernel layout.

    Done OUTSIDE the per-call jit path (review item: packing cost is amortizable).
    Gate-column layout: [i_f, i_r, f_f, f_r, o_f, o_r, g_f, g_r]
      (sigmoid gates first 6H columns, tanh gate last 2H columns).
    """
    H = hidden_size
    I = params["embedding"].shape[1]
    f32 = jnp.float32

    def gate_blocks(w):                       # PyTorch gate order: i, f, g, o
        return {"i": w[0 * H:1 * H], "f": w[1 * H:2 * H],
                "g": w[2 * H:3 * H], "o": w[3 * H:4 * H]}

    wih_f = gate_blocks(params["w_ih_f"])     # each (H, I)
    wih_r = gate_blocks(params["w_ih_r"])
    whh_f = gate_blocks(params["w_hh_f"])     # each (H, H)
    whh_r = gate_blocks(params["w_hh_r"])
    bf = gate_blocks(params["b_ih_f"] + params["b_hh_f"])
    br = gate_blocks(params["b_ih_r"] + params["b_hh_r"])

    zero_ih = jnp.zeros((I, H), f32)
    zero_hh = jnp.zeros((H, H), f32)
    wih_cols, whh_cols, b_cols = [], [], []
    for g in ("i", "f", "o", "g"):            # sigmoid group (i, f, o) first, tanh (g) last
        wih_cols.append(jnp.concatenate([wih_f[g].T, zero_ih], axis=0))    # fwd column
        wih_cols.append(jnp.concatenate([zero_ih, wih_r[g].T], axis=0))    # rev column
        whh_cols.append(jnp.concatenate([whh_f[g].T, zero_hh], axis=0))
        whh_cols.append(jnp.concatenate([zero_hh, whh_r[g].T], axis=0))
        b_cols.append(bf[g])
        b_cols.append(br[g])

    wc = params["wc"]                                  # (H, 2H), PyTorch expects [c_r, c_f]
    packed = dict(
        emb=params["embedding"].astype(f32),
        wih=jnp.concatenate(wih_cols, axis=1),                             # (2I, 8H)
        whh=jnp.concatenate(whh_cols, axis=1),                             # (2H, 8H)
        b=jnp.concatenate(b_cols).reshape(1, 8 * H),                       # (1, 8H)
        wh=params["wh"].T,                                                 # (2H, H)
        bh=params["bh"].reshape(1, H),
        wc=jnp.concatenate([wc[:, H:], wc[:, :H]], axis=1).T,              # (2H, H) for [c_f, c_r]
        bc=params["bc"].reshape(1, H),
    )
    return packed


@functools.partial(jax.jit, static_argnames=("hidden_size",))
def encoder_rnn_forward(sequence, packed, hidden_size):
    """sequence: (seq, 1) int token ids.  Returns (output, (h_n, c_n)) like PyTorch."""
    seq = sequence.shape[0]
    H = hidden_size
    I = packed["emb"].shape[1]

    # VMEM-resident table path is gated on table size (review item 1).
    table_bytes = packed["emb"].shape[0] * packed["emb"].shape[1] * 4
    assert table_bytes <= 8 * 1024 * 1024, (
        "embedding table too large for VMEM-resident path; use the HBM-DMA fallback")

    ids = sequence.reshape(seq).astype(jnp.int32)

    vmem = pl.BlockSpec(memory_space=pltpu.MemorySpace.VMEM)
    out, hn, cn = pl.pallas_call(
        encoder_rnn_kernel,
        out_shape=(
            jax.ShapeDtypeStruct((seq, 2 * H), jnp.float32),
            jax.ShapeDtypeStruct((1, H), jnp.float32),
            jax.ShapeDtypeStruct((1, H), jnp.float32),
        ),
        in_specs=[
            pl.BlockSpec(memory_space=pltpu.MemorySpace.SMEM),   # token ids
            vmem,                                                # embedding table
            vmem, vmem, vmem, vmem, vmem, vmem, vmem,
        ],
        out_specs=(vmem, vmem, vmem),
        scratch_shapes=[
            pltpu.VMEM((seq, 2 * I), jnp.float32),     # [fwd | reversed] embedded rows
            pltpu.VMEM((seq, 8 * H), jnp.float32),     # per-step gate pre-activations
        ],
    )(ids, packed["emb"], packed["wih"], packed["whh"], packed["b"],
      packed["wh"], packed["bh"], packed["wc"], packed["bc"])

    h_n = hn.reshape(1, 1, H)
    c_n = cn.reshape(1, 1, H)
    return out, (h_n, c_n)


def make_params(vocab_size, input_size, hidden_size, key):
    """Deterministic parameter init mimicking the PyTorch module's shapes."""
    ks = jax.random.split(key, 12)
    H = hidden_size
    scale_lstm = 1.0 / jnp.sqrt(H)
    scale_lin = 1.0 / jnp.sqrt(2.0 * H)

    def u(k, shape, s):
        return jax.random.uniform(k, shape, jnp.float32, -s, s)

    return dict(
        embedding=jax.random.normal(ks[0], (vocab_size, input_size), jnp.float32),
        # forward direction
        w_ih_f=u(ks[1], (4 * H, input_size), scale_lstm),
        w_hh_f=u(ks[2], (4 * H, H), scale_lstm),
        b_ih_f=u(ks[3], (4 * H,), scale_lstm),
        b_hh_f=u(ks[4], (4 * H,), scale_lstm),
        # reverse direction
        w_ih_r=u(ks[5], (4 * H, input_size), scale_lstm),
        w_hh_r=u(ks[6], (4 * H, H), scale_lstm),
        b_ih_r=u(ks[7], (4 * H,), scale_lstm),
        b_hh_r=u(ks[8], (4 * H,), scale_lstm),
        # linear heads
        wh=u(ks[9], (H, 2 * H), scale_lin),
        bh=u(ks[10], (H,), scale_lin),
        wc=u(ks[11], (H, 2 * H), scale_lin),
        bc=jnp.zeros((H,), jnp.float32),
    )


def encoder_rnn_reference(sequence, params, hidden_size):
    """Pure-JAX (XLA) reference of the PyTorch forward, for validation only."""
    H = hidden_size
    ids = sequence.reshape(-1).astype(jnp.int32)
    emb = params["embedding"][ids]                               # (seq, I)
    hp = lax.Precision.HIGHEST

    def run_dir(x, w_ih, w_hh, b_ih, b_hh):
        def cell(carry, xt):
            h, c = carry
            gates = (jnp.dot(xt, w_ih.T, precision=hp) + b_ih
                     + jnp.dot(h, w_hh.T, precision=hp) + b_hh)
            i = jax.nn.sigmoid(gates[0:H])
            f = jax.nn.sigmoid(gates[H:2 * H])
            g = jnp.tanh(gates[2 * H:3 * H])
            o = jax.nn.sigmoid(gates[3 * H:4 * H])
            c = f * c + i * g
            h = o * jnp.tanh(c)
            return (h, c), h
        (h, c), hs = lax.scan(cell, (jnp.zeros(H), jnp.zeros(H)), x)
        return hs, c

    hs_f, c_f = run_dir(emb, params["w_ih_f"], params["w_hh_f"],
                        params["b_ih_f"], params["b_hh_f"])
    hs_r_rev, c_r = run_dir(emb[::-1], params["w_ih_r"], params["w_hh_r"],
                            params["b_ih_r"], params["b_hh_r"])
    hs_r = hs_r_rev[::-1]
    output = jnp.concatenate([hs_f, hs_r], axis=1)               # (seq, 2H)
    h_n = jnp.dot(output[-1], params["wh"].T, precision=hp) + params["bh"]
    c_n = jnp.dot(jnp.concatenate([c_r, c_f]), params["wc"].T, precision=hp) + params["bc"]
    return output, (h_n.reshape(1, 1, H), c_n.reshape(1, 1, H))


if __name__ == "__main__":
    vocab_size = 1000
    input_size = 16
    hidden_size = 32
    seq_len = 8

    key = jax.random.PRNGKey(0)
    k_seq, k_par = jax.random.split(key)

    # token id sequence, shape (seq_len, 1) with implicit batch = 1 (as in the module)
    sequence = jax.random.randint(k_seq, (seq_len, 1), 0, vocab_size, dtype=jnp.int32)
    params = make_params(vocab_size, input_size, hidden_size, k_par)

    # one-time weight packing outside the per-call jit path (review item)
    packed = pack_encoder_params(params, hidden_size)
    packed = jax.tree_util.tree_map(jax.block_until_ready, packed)

    output, (h_n, c_n) = encoder_rnn_forward(sequence, packed, hidden_size)
    jax.block_until_ready((output, h_n, c_n))

    assert output.shape == (seq_len, 2 * hidden_size)
    assert h_n.shape == (1, 1, hidden_size)
    assert c_n.shape == (1, 1, hidden_size)

    # validate against a pure-JAX reference (tolerance tightened from 2e-3 per review;
    # all-f32 path, residual diffs are summation order / EUP rounding only)
    ref_out, (ref_h, ref_c) = encoder_rnn_reference(sequence, params, hidden_size)
    np.testing.assert_allclose(np.asarray(output), np.asarray(ref_out), rtol=1e-4, atol=1e-4)
    np.testing.assert_allclose(np.asarray(h_n), np.asarray(ref_h), rtol=1e-4, atol=1e-4)
    np.testing.assert_allclose(np.asarray(c_n), np.asarray(ref_c), rtol=1e-4, atol=1e-4)

    print("KERNEL_OK")
</pallas_src>

<mosaic_0001>
module attributes {stable_mosaic.version = 11 : i64} {
  func.func @encoder_rnn_kernel(%arg0: memref<8xi32, #tpu.memory_space<smem>>, %arg1: memref<1000x16xf32, #tpu.memory_space<vmem>>, %arg2: memref<32x256xf32, #tpu.memory_space<vmem>>, %arg3: memref<64x256xf32, #tpu.memory_space<vmem>>, %arg4: memref<1x256xf32, #tpu.memory_space<vmem>>, %arg5: memref<64x32xf32, #tpu.memory_space<vmem>>, %arg6: memref<1x32xf32, #tpu.memory_space<vmem>>, %arg7: memref<64x32xf32, #tpu.memory_space<vmem>>, %arg8: memref<1x32xf32, #tpu.memory_space<vmem>>, %arg9: memref<8x64xf32, #tpu.memory_space<vmem>>, %arg10: memref<1x32xf32, #tpu.memory_space<vmem>>, %arg11: memref<1x32xf32, #tpu.memory_space<vmem>>, %arg12: memref<8x32xf32, #tpu.memory_space<vmem>>, %arg13: memref<8x256xf32, #tpu.memory_space<vmem>>) attributes {dimension_semantics = [], scalar_prefetch = 0 : i64, scratch_operands = 2 : i64, tpu.core_type = #tpu.core_type<tc>} {
    %c0_i32 = arith.constant 0 : i32
    %0 = arith.index_cast %c0_i32 : i32 to index
    %1 = memref.load %arg0[%0] : memref<8xi32, #tpu.memory_space<smem>>
    %2 = arith.index_cast %1 : i32 to index
    %c0 = arith.constant 0 : index
    %3 = vector.load %arg1[%2, %c0] : memref<1000x16xf32, #tpu.memory_space<vmem>>, vector<1x16xf32>
    %4 = arith.index_cast %c0_i32 : i32 to index
    %c0_0 = arith.constant 0 : index
    %5 = vector.load %arg12[%4, %c0_0] : memref<8x32xf32, #tpu.memory_space<vmem>>, vector<1x16xf32>
    tpu.vector_store %arg12[%4, %c0_0], %3 {strides = array<i32>} : memref<8x32xf32, #tpu.memory_space<vmem>>, vector<1x16xf32>,
    %c7_i32 = arith.constant 7 : i32
    %6 = arith.subi %c7_i32, %c0_i32 : i32
    %7 = arith.index_cast %6 : i32 to index
    %c16 = arith.constant 16 : index
    %8 = vector.load %arg12[%7, %c16] : memref<8x32xf32, #tpu.memory_space<vmem>>, vector<1x16xf32>
    tpu.vector_store %arg12[%7, %c16], %3 {strides = array<i32>} : memref<8x32xf32, #tpu.memory_space<vmem>>, vector<1x16xf32>,
    %c1_i32 = arith.constant 1 : i32
    %9 = arith.index_cast %c1_i32 : i32 to index
    %10 = memref.load %arg0[%9] : memref<8xi32, #tpu.memory_space<smem>>
    %11 = arith.index_cast %10 : i32 to index
    %c0_1 = arith.constant 0 : index
    %12 = vector.load %arg1[%11, %c0_1] : memref<1000x16xf32, #tpu.memory_space<vmem>>, vector<1x16xf32>
    %13 = arith.index_cast %c1_i32 : i32 to index
    %c0_2 = arith.constant 0 : index
    %14 = vector.load %arg12[%13, %c0_2] : memref<8x32xf32, #tpu.memory_space<vmem>>, vector<1x16xf32>
    tpu.vector_store %arg12[%13, %c0_2], %12 {strides = array<i32>} : memref<8x32xf32, #tpu.memory_space<vmem>>, vector<1x16xf32>,
    %c7_i32_3 = arith.constant 7 : i32
    %15 = arith.subi %c7_i32_3, %c1_i32 : i32
    %16 = arith.index_cast %15 : i32 to index
    %c16_4 = arith.constant 16 : index
    %17 = vector.load %arg12[%16, %c16_4] : memref<8x32xf32, #tpu.memory_space<vmem>>, vector<1x16xf32>
    tpu.vector_store %arg12[%16, %c16_4], %12 {strides = array<i32>} : memref<8x32xf32, #tpu.memory_space<vmem>>, vector<1x16xf32>,
    %c2_i32 = arith.constant 2 : i32
    %18 = arith.index_cast %c2_i32 : i32 to index
    %19 = memref.load %arg0[%18] : memref<8xi32, #tpu.memory_space<smem>>
    %20 = arith.index_cast %19 : i32 to index
    %c0_5 = arith.constant 0 : index
    %21 = vector.load %arg1[%20, %c0_5] : memref<1000x16xf32, #tpu.memory_space<vmem>>, vector<1x16xf32>
    %22 = arith.index_cast %c2_i32 : i32 to index
    %c0_6 = arith.constant 0 : index
    %23 = vector.load %arg12[%22, %c0_6] : memref<8x32xf32, #tpu.memory_space<vmem>>, vector<1x16xf32>
    tpu.vector_store %arg12[%22, %c0_6], %21 {strides = array<i32>} : memref<8x32xf32, #tpu.memory_space<vmem>>, vector<1x16xf32>,
    %c7_i32_7 = arith.constant 7 : i32
    %24 = arith.subi %c7_i32_7, %c2_i32 : i32
    %25 = arith.index_cast %24 : i32 to index
    %c16_8 = arith.constant 16 : index
    %26 = vector.load %arg12[%25, %c16_8] : memref<8x32xf32, #tpu.memory_space<vmem>>, vector<1x16xf32>
    tpu.vector_store %arg12[%25, %c16_8], %21 {strides = array<i32>} : memref<8x32xf32, #tpu.memory_space<vmem>>, vector<1x16xf32>,
    %c3_i32 = arith.constant 3 : i32
    %27 = arith.index_cast %c3_i32 : i32 to index
    %28 = memref.load %arg0[%27] : memref<8xi32, #tpu.memory_space<smem>>
    %29 = arith.index_cast %28 : i32 to index
    %c0_9 = arith.constant 0 : index
    %30 = vector.load %arg1[%29, %c0_9] : memref<1000x16xf32, #tpu.memory_space<vmem>>, vector<1x16xf32>
    %31 = arith.index_cast %c3_i32 : i32 to index
    %c0_10 = arith.constant 0 : index
    %32 = vector.load %arg12[%31, %c0_10] : memref<8x32xf32, #tpu.memory_space<vmem>>, vector<1x16xf32>
    tpu.vector_store %arg12[%31, %c0_10], %30 {strides = array<i32>} : memref<8x32xf32, #tpu.memory_space<vmem>>, vector<1x16xf32>,
    %c7_i32_11 = arith.constant 7 : i32
    %33 = arith.subi %c7_i32_11, %c3_i32 : i32
    %34 = arith.index_cast %33 : i32 to index
    %c16_12 = arith.constant 16 : index
    %35 = vector.load %arg12[%34, %c16_12] : memref<8x32xf32, #tpu.memory_space<vmem>>, vector<1x16xf32>
    tpu.vector_store %arg12[%34, %c16_12], %30 {strides = array<i32>} : memref<8x32xf32, #tpu.memory_space<vmem>>, vector<1x16xf32>,
    %c4_i32 = arith.constant 4 : i32
    %36 = arith.index_cast %c4_i32 : i32 to index
    %37 = memref.load %arg0[%36] : memref<8xi32, #tpu.memory_space<smem>>
    %38 = arith.index_cast %37 : i32 to index
    %c0_13 = arith.constant 0 : index
    %39 = vector.load %arg1[%38, %c0_13] : memref<1000x16xf32, #tpu.memory_space<vmem>>, vector<1x16xf32>
    %40 = arith.index_cast %c4_i32 : i32 to index
    %c0_14 = arith.constant 0 : index
    %41 = vector.load %arg12[%40, %c0_14] : memref<8x32xf32, #tpu.memory_space<vmem>>, vector<1x16xf32>
    tpu.vector_store %arg12[%40, %c0_14], %39 {strides = array<i32>} : memref<8x32xf32, #tpu.memory_space<vmem>>, vector<1x16xf32>,
    %c7_i32_15 = arith.constant 7 : i32
    %42 = arith.subi %c7_i32_15, %c4_i32 : i32
    %43 = arith.index_cast %42 : i32 to index
    %c16_16 = arith.constant 16 : index
    %44 = vector.load %arg12[%43, %c16_16] : memref<8x32xf32, #tpu.memory_space<vmem>>, vector<1x16xf32>
    tpu.vector_store %arg12[%43, %c16_16], %39 {strides = array<i32>} : memref<8x32xf32, #tpu.memory_space<vmem>>, vector<1x16xf32>,
    %c5_i32 = arith.constant 5 : i32
    %45 = arith.index_cast %c5_i32 : i32 to index
    %46 = memref.load %arg0[%45] : memref<8xi32, #tpu.memory_space<smem>>
    %47 = arith.index_cast %46 : i32 to index
    %c0_17 = arith.constant 0 : index
    %48 = vector.load %arg1[%47, %c0_17] : memref<1000x16xf32, #tpu.memory_space<vmem>>, vector<1x16xf32>
    %49 = arith.index_cast %c5_i32 : i32 to index
    %c0_18 = arith.constant 0 : index
    %50 = vector.load %arg12[%49, %c0_18] : memref<8x32xf32, #tpu.memory_space<vmem>>, vector<1x16xf32>
    tpu.vector_store %arg12[%49, %c0_18], %48 {strides = array<i32>} : memref<8x32xf32, #tpu.memory_space<vmem>>, vector<1x16xf32>,
    %c7_i32_19 = arith.constant 7 : i32
    %51 = arith.subi %c7_i32_19, %c5_i32 : i32
    %52 = arith.index_cast %51 : i32 to index
    %c16_20 = arith.constant 16 : index
    %53 = vector.load %arg12[%52, %c16_20] : memref<8x32xf32, #tpu.memory_space<vmem>>, vector<1x16xf32>
    tpu.vector_store %arg12[%52, %c16_20], %48 {strides = array<i32>} : memref<8x32xf32, #tpu.memory_space<vmem>>, vector<1x16xf32>,
    %c6_i32 = arith.constant 6 : i32
    %54 = arith.index_cast %c6_i32 : i32 to index
    %55 = memref.load %arg0[%54] : memref<8xi32, #tpu.memory_space<smem>>
    %56 = arith.index_cast %55 : i32 to index
    %c0_21 = arith.constant 0 : index
    %57 = vector.load %arg1[%56, %c0_21] : memref<1000x16xf32, #tpu.memory_space<vmem>>, vector<1x16xf32>
    %58 = arith.index_cast %c6_i32 : i32 to index
    %c0_22 = arith.constant 0 : index
    %59 = vector.load %arg12[%58, %c0_22] : memref<8x32xf32, #tpu.memory_space<vmem>>, vector<1x16xf32>
    tpu.vector_store %arg12[%58, %c0_22], %57 {strides = array<i32>} : memref<8x32xf32, #tpu.memory_space<vmem>>, vector<1x16xf32>,
    %c7_i32_23 = arith.constant 7 : i32
    %60 = arith.subi %c7_i32_23, %c6_i32 : i32
    %61 = arith.index_cast %60 : i32 to index
    %c16_24 = arith.constant 16 : index
    %62 = vector.load %arg12[%61, %c16_24] : memref<8x32xf32, #tpu.memory_space<vmem>>, vector<1x16xf32>
    tpu.vector_store %arg12[%61, %c16_24], %57 {strides = array<i32>} : memref<8x32xf32, #tpu.memory_space<vmem>>, vector<1x16xf32>,
    %c7_i32_25 = arith.constant 7 : i32
    %63 = arith.index_cast %c7_i32_25 : i32 to index
    %64 = memref.load %arg0[%63] : memref<8xi32, #tpu.memory_space<smem>>
    %65 = arith.index_cast %64 : i32 to index
    %c0_26 = arith.constant 0 : index
    %66 = vector.load %arg1[%65, %c0_26] : memref<1000x16xf32, #tpu.memory_space<vmem>>, vector<1x16xf32>
    %67 = arith.index_cast %c7_i32_25 : i32 to index
    %c0_27 = arith.constant 0 : index
    %68 = vector.load %arg12[%67, %c0_27] : memref<8x32xf32, #tpu.memory_space<vmem>>, vector<1x16xf32>
    tpu.vector_store %arg12[%67, %c0_27], %66 {strides = array<i32>} : memref<8x32xf32, #tpu.memory_space<vmem>>, vector<1x16xf32>,
    %c7_i32_28 = arith.constant 7 : i32
    %69 = arith.subi %c7_i32_28, %c7_i32_25 : i32
    %70 = arith.index_cast %69 : i32 to index
    %c16_29 = arith.constant 16 : index
    %71 = vector.load %arg12[%70, %c16_29] : memref<8x32xf32, #tpu.memory_space<vmem>>, vector<1x16xf32>
    tpu.vector_store %arg12[%70, %c16_29], %66 {strides = array<i32>} : memref<8x32xf32, #tpu.memory_space<vmem>>, vector<1x16xf32>,
    %c8_i32 = arith.constant 8 : i32
    %c0_30 = arith.constant 0 : index
    %c0_31 = arith.constant 0 : index
    %72 = vector.load %arg12[%c0_30, %c0_31] : memref<8x32xf32, #tpu.memory_space<vmem>>, vector<8x32xf32>
    %c0_32 = arith.constant 0 : index
    %c0_33 = arith.constant 0 : index
    %73 = vector.load %arg2[%c0_32, %c0_33] : memref<32x256xf32, #tpu.memory_space<vmem>>, vector<32x256xf32>
    %cst = arith.constant dense<0.000000e+00> : vector<8x256xf32>
    %74 = tpu.matmul %72, %73, %cst {dimension_numbers = #tpu.dot_dimension_numbers<[1], [0], [0], [1], [0, 0, 1, 1], [], []>} : vector<8x32xf32>, vector<32x256xf32>, vector<8x256xf32> -> vector<8x256xf32>
    %c0_34 = arith.constant 0 : index
    %c0_35 = arith.constant 0 : index
    %75 = vector.load %arg4[%c0_34, %c0_35] : memref<1x256xf32, #tpu.memory_space<vmem>>, vector<1x256xf32>
    %76 = vector.broadcast %75 : vector<1x256xf32> to vector<8x256xf32>
    %77 = arith.addf %74, %76 : vector<8x256xf32>
    %c0_36 = arith.constant 0 : index
    %c0_37 = arith.constant 0 : index
    %78 = vector.load %arg13[%c0_36, %c0_37] : memref<8x256xf32, #tpu.memory_space<vmem>>, vector<8x256xf32>
    tpu.vector_store %arg13[%c0_36, %c0_37], %77 {strides = array<i32>} : memref<8x256xf32, #tpu.memory_space<vmem>>, vector<8x256xf32>,
    %cst_38 = arith.constant 0.000000e+00 : f32
    %79 = vector.broadcast %cst_38 : f32 to vector<1x64xf32>
    %cst_39 = arith.constant 0.000000e+00 : f32
    %80 = vector.broadcast %cst_39 : f32 to vector<1x64xf32>
    %c0_i32_40 = arith.constant 0 : i32
    %81 = arith.index_cast %c0_i32_40 : i32 to index
    %c0_41 = arith.constant 0 : index
    %82 = vector.load %arg13[%81, %c0_41] : memref<8x256xf32, #tpu.memory_space<vmem>>, vector<1x256xf32>
    %c0_42 = arith.constant 0 : index
    %c0_43 = arith.constant 0 : index
    %83 = vector.load %arg3[%c0_42, %c0_43] : memref<64x256xf32, #tpu.memory_space<vmem>>, vector<64x256xf32>
    %cst_44 = arith.constant dense<0.000000e+00> : vector<1x256xf32>
    %84 = tpu.matmul %79, %83, %cst_44 {dimension_numbers = #tpu.dot_dimension_numbers<[1], [0], [0], [1], [0, 0, 1, 1], [], []>} : vector<1x64xf32>, vector<64x256xf32>, vector<1x256xf32> -> vector<1x256xf32>
    %85 = arith.addf %82, %84 : vector<1x256xf32>
    %86 = vector.extract_strided_slice %85 {offsets = [0, 0], sizes = [1, 192], strides = [1, 1]} : vector<1x256xf32> to vector<1x192xf32>
    %cst_45 = arith.constant 5.000000e-01 : f32
    %87 = vector.broadcast %cst_45 : f32 to vector<1x192xf32>
    %88 = arith.mulf %87, %86 : vector<1x192xf32>
    %89 = math.tanh %88 : vector<1x192xf32>
    %cst_46 = arith.constant 1.000000e+00 : f32
    %90 = vector.broadcast %cst_46 : f32 to vector<1x192xf32>
    %91 = arith.addf %89, %90 : vector<1x192xf32>
    %cst_47 = arith.constant 5.000000e-01 : f32
    %92 = vector.broadcast %cst_47 : f32 to vector<1x192xf32>
    %93 = arith.mulf %92, %91 : vector<1x192xf32>
    %94 = vector.extract_strided_slice %85 {offsets = [0, 192], sizes = [1, 64], strides = [1, 1]} : vector<1x256xf32> to vector<1x64xf32>
    %95 = math.tanh %94 : vector<1x64xf32>
    %96 = vector.extract_strided_slice %93 {offsets = [0, 0], sizes = [1, 64], strides = [1, 1]} : vector<1x192xf32> to vector<1x64xf32>
    %97 = vector.extract_strided_slice %93 {offsets = [0, 64], sizes = [1, 64], strides = [1, 1]} : vector<1x192xf32> to vector<1x64xf32>
    %98 = vector.extract_strided_slice %93 {offsets = [0, 128], sizes = [1, 64], strides = [1, 1]} : vector<1x192xf32> to vector<1x64xf32>
    %99 = arith.mulf %97, %80 : vector<1x64xf32>
    %100 = arith.mulf %96, %95 : vector<1x64xf32>
    %101 = arith.addf %99, %100 : vector<1x64xf32>
    %102 = math.tanh %101 : vector<1x64xf32>
    %103 = arith.mulf %98, %102 : vector<1x64xf32>
    %104 = vector.extract_strided_slice %103 {offsets = [0, 0], sizes = [1, 32], strides = [1, 1]} : vector<1x64xf32> to vector<1x32xf32>
    %105 = arith.index_cast %c0_i32_40 : i32 to index
    %c0_48 = arith.constant 0 : index
    %106 = vector.load %arg9[%105, %c0_48] : memref<8x64xf32, #tpu.memory_space<vmem>>, vector<1x32xf32>
    tpu.vector_store %arg9[%105, %c0_48], %104 {strides = array<i32>} : memref<8x64xf32, #tpu.memory_space<vmem>>, vector<1x32xf32>,
    %107 = vector.extract_strided_slice %103 {offsets = [0, 32], sizes = [1, 32], strides = [1, 1]} : vector<1x64xf32> to vector<1x32xf32>
    %c7_i32_49 = arith.constant 7 : i32
    %108 = arith.subi %c7_i32_49, %c0_i32_40 : i32
    %109 = arith.index_cast %108 : i32 to index
    %c32 = arith.constant 32 : index
    %110 = vector.load %arg9[%109, %c32] : memref<8x64xf32, #tpu.memory_space<vmem>>, vector<1x32xf32>
    tpu.vector_store %arg9[%109, %c32], %107 {strides = array<i32>} : memref<8x64xf32, #tpu.memory_space<vmem>>, vector<1x32xf32>,
    %c1_i32_50 = arith.constant 1 : i32
    %111 = arith.index_cast %c1_i32_50 : i32 to index
    %c0_51 = arith.constant 0 : index
    %112 = vector.load %arg13[%111, %c0_51] : memref<8x256xf32, #tpu.memory_space<vmem>>, vector<1x256xf32>
    %c0_52 = arith.constant 0 : index
    %c0_53 = arith.constant 0 : index
    %113 = vector.load %arg3[%c0_52, %c0_53] : memref<64x256xf32, #tpu.memory_space<vmem>>, vector<64x256xf32>
    %cst_54 = arith.constant dense<0.000000e+00> : vector<1x256xf32>
    %114 = tpu.matmul %103, %113, %cst_54 {dimension_numbers = #tpu.dot_dimension_numbers<[1], [0], [0], [1], [0, 0, 1, 1], [], []>} : vector<1x64xf32>, vector<64x256xf32>, vector<1x256xf32> -> vector<1x256xf32>
    %115 = arith.addf %112, %114 : vector<1x256xf32>
    %116 = vector.extract_strided_slice %115 {offsets = [0, 0], sizes = [1, 192], strides = [1, 1]} : vector<1x256xf32> to vector<1x192xf32>
    %cst_55 = arith.constant 5.000000e-01 : f32
    %117 = vector.broadcast %cst_55 : f32 to vector<1x192xf32>
    %118 = arith.mulf %117, %116 : vector<1x192xf32>
    %119 = math.tanh %118 : vector<1x192xf32>
    %cst_56 = arith.constant 1.000000e+00 : f32
    %120 = vector.broadcast %cst_56 : f32 to vector<1x192xf32>
    %121 = arith.addf %119, %120 : vector<1x192xf32>
    %cst_57 = arith.constant 5.000000e-01 : f32
    %122 = vector.broadcast %cst_57 : f32 to vector<1x192xf32>
    %123 = arith.mulf %122, %121 : vector<1x192xf32>
    %124 = vector.extract_strided_slice %115 {offsets = [0, 192], sizes = [1, 64], strides = [1, 1]} : vector<1x256xf32> to vector<1x64xf32>
    %125 = math.tanh %124 : vector<1x64xf32>
    %126 = vector.extract_strided_slice %123 {offsets = [0, 0], sizes = [1, 64], strides = [1, 1]} : vector<1x192xf32> to vector<1x64xf32>
    %127 = vector.extract_strided_slice %123 {offsets = [0, 64], sizes = [1, 64], strides = [1, 1]} : vector<1x192xf32> to vector<1x64xf32>
    %128 = vector.extract_strided_slice %123 {offsets = [0, 128], sizes = [1, 64], strides = [1, 1]} : vector<1x192xf32> to vector<1x64xf32>
    %129 = arith.mulf %127, %101 : vector<1x64xf32>
    %130 = arith.mulf %126, %125 : vector<1x64xf32>
    %131 = arith.addf %129, %130 : vector<1x64xf32>
    %132 = math.tanh %131 : vector<1x64xf32>
    %133 = arith.mulf %128, %132 : vector<1x64xf32>
    %134 = vector.extract_strided_slice %133 {offsets = [0, 0], sizes = [1, 32], strides = [1, 1]} : vector<1x64xf32> to vector<1x32xf32>
    %135 = arith.index_cast %c1_i32_50 : i32 to index
    %c0_58 = arith.constant 0 : index
    %136 = vector.load %arg9[%135, %c0_58] : memref<8x64xf32, #tpu.memory_space<vmem>>, vector<1x32xf32>
    tpu.vector_store %arg9[%135, %c0_58], %134 {strides = array<i32>} : memref<8x64xf32, #tpu.memory_space<vmem>>, vector<1x32xf32>,
    %137 = vector.extract_strided_slice %133 {offsets = [0, 32], sizes = [1, 32], strides = [1, 1]} : vector<1x64xf32> to vector<1x32xf32>
    %c7_i32_59 = arith.constant 7 : i32
    %138 = arith.subi %c7_i32_59, %c1_i32_50 : i32
    %139 = arith.index_cast %138 : i32 to index
    %c32_60 = arith.constant 32 : index
    %140 = vector.load %arg9[%139, %c32_60] : memref<8x64xf32, #tpu.memory_space<vmem>>, vector<1x32xf32>
    tpu.vector_store %arg9[%139, %c32_60], %137 {strides = array<i32>} : memref<8x64xf32, #tpu.memory_space<vmem>>, vector<1x32xf32>,
    %c2_i32_61 = arith.constant 2 : i32
    %141 = arith.index_cast %c2_i32_61 : i32 to index
    %c0_62 = arith.constant 0 : index
    %142 = vector.load %arg13[%141, %c0_62] : memref<8x256xf32, #tpu.memory_space<vmem>>, vector<1x256xf32>
    %c0_63 = arith.constant 0 : index
    %c0_64 = arith.constant 0 : index
    %143 = vector.load %arg3[%c0_63, %c0_64] : memref<64x256xf32, #tpu.memory_space<vmem>>, vector<64x256xf32>
    %cst_65 = arith.constant dense<0.000000e+00> : vector<1x256xf32>
    %144 = tpu.matmul %133, %143, %cst_65 {dimension_numbers = #tpu.dot_dimension_numbers<[1], [0], [0], [1], [0, 0, 1, 1], [], []>} : vector<1x64xf32>, vector<64x256xf32>, vector<1x256xf32> -> vector<1x256xf32>
    %145 = arith.addf %142, %144 : vector<1x256xf32>
    %146 = vector.extract_strided_slice %145 {offsets = [0, 0], sizes = [1, 192], strides = [1, 1]} : vector<1x256xf32> to vector<1x192xf32>
    %cst_66 = arith.constant 5.000000e-01 : f32
    %147 = vector.broadcast %cst_66 : f32 to vector<1x192xf32>
    %148 = arith.mulf %147, %146 : vector<1x192xf32>
    %149 = math.tanh %148 : vector<1x192xf32>
    %cst_67 = arith.constant 1.000000e+00 : f32
    %150 = vector.broadcast %cst_67 : f32 to vector<1x192xf32>
    %151 = arith.addf %149, %150 : vector<1x192xf32>
    %cst_68 = arith.constant 5.000000e-01 : f32
    %152 = vector.broadcast %cst_68 : f32 to vector<1x192xf32>
    %153 = arith.mulf %152, %151 : vector<1x192xf32>
    %154 = vector.extract_strided_slice %145 {offsets = [0, 192], sizes = [1, 64], strides = [1, 1]} : vector<1x256xf32> to vector<1x64xf32>
    %155 = math.tanh %154 : vector<1x64xf32>
    %156 = vector.extract_strided_slice %153 {offsets = [0, 0], sizes = [1, 64], strides = [1, 1]} : vector<1x192xf32> to vector<1x64xf32>
    %157 = vector.extract_strided_slice %153 {offsets = [0, 64], sizes = [1, 64], strides = [1, 1]} : vector<1x192xf32> to vector<1x64xf32>
    %158 = vector.extract_strided_slice %153 {offsets = [0, 128], sizes = [1, 64], strides = [1, 1]} : vector<1x192xf32> to vector<1x64xf32>
    %159 = arith.mulf %157, %131 : vector<1x64xf32>
    %160 = arith.mulf %156, %155 : vector<1x64xf32>
    %161 = arith.addf %159, %160 : vector<1x64xf32>
    %162 = math.tanh %161 : vector<1x64xf32>
    %163 = arith.mulf %158, %162 : vector<1x64xf32>
    %164 = vector.extract_strided_slice %163 {offsets = [0, 0], sizes = [1, 32], strides = [1, 1]} : vector<1x64xf32> to vector<1x32xf32>
    %165 = arith.index_cast %c2_i32_61 : i32 to index
    %c0_69 = arith.constant 0 : index
    %166 = vector.load %arg9[%165, %c0_69] : memref<8x64xf32, #tpu.memory_space<vmem>>, vector<1x32xf32>
    tpu.vector_store %arg9[%165, %c0_69], %164 {strides = array<i32>} : memref<8x64xf32, #tpu.memory_space<vmem>>, vector<1x32xf32>,
    %167 = vector.extract_strided_slice %163 {offsets = [0, 32], sizes = [1, 32], strides = [1, 1]} : vector<1x64xf32> to vector<1x32xf32>
    %c7_i32_70 = arith.constant 7 : i32
    %168 = arith.subi %c7_i32_70, %c2_i32_61 : i32
    %169 = arith.index_cast %168 : i32 to index
    %c32_71 = arith.constant 32 : index
    %170 = vector.load %arg9[%169, %c32_71] : memref<8x64xf32, #tpu.memory_space<vmem>>, vector<1x32xf32>
    tpu.vector_store %arg9[%169, %c32_71], %167 {strides = array<i32>} : memref<8x64xf32, #tpu.memory_space<vmem>>, vector<1x32xf32>,
    %c3_i32_72 = arith.constant 3 : i32
    %171 = arith.index_cast %c3_i32_72 : i32 to index
    %c0_73 = arith.constant 0 : index
    %172 = vector.load %arg13[%171, %c0_73] : memref<8x256xf32, #tpu.memory_space<vmem>>, vector<1x256xf32>
    %c0_74 = arith.constant 0 : index
    %c0_75 = arith.constant 0 : index
    %173 = vector.load %arg3[%c0_74, %c0_75] : memref<64x256xf32, #tpu.memory_space<vmem>>, vector<64x256xf32>
    %cst_76 = arith.constant dense<0.000000e+00> : vector<1x256xf32>
    %174 = tpu.matmul %163, %173, %cst_76 {dimension_numbers = #tpu.dot_dimension_numbers<[1], [0], [0], [1], [0, 0, 1, 1], [], []>} : vector<1x64xf32>, vector<64x256xf32>, vector<1x256xf32> -> vector<1x256xf32>
    %175 = arith.addf %172, %174 : vector<1x256xf32>
    %176 = vector.extract_strided_slice %175 {offsets = [0, 0], sizes = [1, 192], strides = [1, 1]} : vector<1x256xf32> to vector<1x192xf32>
    %cst_77 = arith.constant 5.000000e-01 : f32
    %177 = vector.broadcast %cst_77 : f32 to vector<1x192xf32>
    %178 = arith.mulf %177, %176 : vector<1x192xf32>
    %179 = math.tanh %178 : vector<1x192xf32>
    %cst_78 = arith.constant 1.000000e+00 : f32
    %180 = vector.broadcast %cst_78 : f32 to vector<1x192xf32>
    %181 = arith.addf %179, %180 : vector<1x192xf32>
    %cst_79 = arith.constant 5.000000e-01 : f32
    %182 = vector.broadcast %cst_79 : f32 to vector<1x192xf32>
    %183 = arith.mulf %182, %181 : vector<1x192xf32>
    %184 = vector.extract_strided_slice %175 {offsets = [0, 192], sizes = [1, 64], strides = [1, 1]} : vector<1x256xf32> to vector<1x64xf32>
    %185 = math.tanh %184 : vector<1x64xf32>
    %186 = vector.extract_strided_slice %183 {offsets = [0, 0], sizes = [1, 64], strides = [1, 1]} : vector<1x192xf32> to vector<1x64xf32>
    %187 = vector.extract_strided_slice %183 {offsets = [0, 64], sizes = [1, 64], strides = [1, 1]} : vector<1x192xf32> to vector<1x64xf32>
    %188 = vector.extract_strided_slice %183 {offsets = [0, 128], sizes = [1, 64], strides = [1, 1]} : vector<1x192xf32> to vector<1x64xf32>
    %189 = arith.mulf %187, %161 : vector<1x64xf32>
    %190 = arith.mulf %186, %185 : vector<1x64xf32>
    %191 = arith.addf %189, %190 : vector<1x64xf32>
    %192 = math.tanh %191 : vector<1x64xf32>
    %193 = arith.mulf %188, %192 : vector<1x64xf32>
    %194 = vector.extract_strided_slice %193 {offsets = [0, 0], sizes = [1, 32], strides = [1, 1]} : vector<1x64xf32> to vector<1x32xf32>
    %195 = arith.index_cast %c3_i32_72 : i32 to index
    %c0_80 = arith.constant 0 : index
    %196 = vector.load %arg9[%195, %c0_80] : memref<8x64xf32, #tpu.memory_space<vmem>>, vector<1x32xf32>
    tpu.vector_store %arg9[%195, %c0_80], %194 {strides = array<i32>} : memref<8x64xf32, #tpu.memory_space<vmem>>, vector<1x32xf32>,
    %197 = vector.extract_strided_slice %193 {offsets = [0, 32], sizes = [1, 32], strides = [1, 1]} : vector<1x64xf32> to vector<1x32xf32>
    %c7_i32_81 = arith.constant 7 : i32
    %198 = arith.subi %c7_i32_81, %c3_i32_72 : i32
    %199 = arith.index_cast %198 : i32 to index
    %c32_82 = arith.constant 32 : index
    %200 = vector.load %arg9[%199, %c32_82] : memref<8x64xf32, #tpu.memory_space<vmem>>, vector<1x32xf32>
    tpu.vector_store %arg9[%199, %c32_82], %197 {strides = array<i32>} : memref<8x64xf32, #tpu.memory_space<vmem>>, vector<1x32xf32>,
    %c4_i32_83 = arith.constant 4 : i32
    %201 = arith.index_cast %c4_i32_83 : i32 to index
    %c0_84 = arith.constant 0 : index
    %202 = vector.load %arg13[%201, %c0_84] : memref<8x256xf32, #tpu.memory_space<vmem>>, vector<1x256xf32>
    %c0_85 = arith.constant 0 : index
    %c0_86 = arith.constant 0 : index
    %203 = vector.load %arg3[%c0_85, %c0_86] : memref<64x256xf32, #tpu.memory_space<vmem>>, vector<64x256xf32>
    %cst_87 = arith.constant dense<0.000000e+00> : vector<1x256xf32>
    %204 = tpu.matmul %193, %203, %cst_87 {dimension_numbers = #tpu.dot_dimension_numbers<[1], [0], [0], [1], [0, 0, 1, 1], [], []>} : vector<1x64xf32>, vector<64x256xf32>, vector<1x256xf32> -> vector<1x256xf32>
    %205 = arith.addf %202, %204 : vector<1x256xf32>
    %206 = vector.extract_strided_slice %205 {offsets = [0, 0], sizes = [1, 192], strides = [1, 1]} : vector<1x256xf32> to vector<1x192xf32>
    %cst_88 = arith.constant 5.000000e-01 : f32
    %207 = vector.broadcast %cst_88 : f32 to vector<1x192xf32>
    %208 = arith.mulf %207, %206 : vector<1x192xf32>
    %209 = math.tanh %208 : vector<1x192xf32>
    %cst_89 = arith.constant 1.000000e+00 : f32
    %210 = vector.broadcast %cst_89 : f32 to vector<1x192xf32>
    %211 = arith.addf %209, %210 : vector<1x192xf32>
    %cst_90 = arith.constant 5.000000e-01 : f32
    %212 = vector.broadcast %cst_90 : f32 to vector<1x192xf32>
    %213 = arith.mulf %212, %211 : vector<1x192xf32>
    %214 = vector.extract_strided_slice %205 {offsets = [0, 192], sizes = [1, 64], strides = [1, 1]} : vector<1x256xf32> to vector<1x64xf32>
    %215 = math.tanh %214 : vector<1x64xf32>
    %216 = vector.extract_strided_slice %213 {offsets = [0, 0], sizes = [1, 64], strides = [1, 1]} : vector<1x192xf32> to vector<1x64xf32>
    %217 = vector.extract_strided_slice %213 {offsets = [0, 64], sizes = [1, 64], strides = [1, 1]} : vector<1x192xf32> to vector<1x64xf32>
    %218 = vector.extract_strided_slice %213 {offsets = [0, 128], sizes = [1, 64], strides = [1, 1]} : vector<1x192xf32> to vector<1x64xf32>
    %219 = arith.mulf %217, %191 : vector<1x64xf32>
    %220 = arith.mulf %216, %215 : vector<1x64xf32>
    %221 = arith.addf %219, %220 : vector<1x64xf32>
    %222 = math.tanh %221 : vector<1x64xf32>
    %223 = arith.mulf %218, %222 : vector<1x64xf32>
    %224 = vector.extract_strided_slice %223 {offsets = [0, 0], sizes = [1, 32], strides = [1, 1]} : vector<1x64xf32> to vector<1x32xf32>
    %225 = arith.index_cast %c4_i32_83 : i32 to index
    %c0_91 = arith.constant 0 : index
    %226 = vector.load %arg9[%225, %c0_91] : memref<8x64xf32, #tpu.memory_space<vmem>>, vector<1x32xf32>
    tpu.vector_store %arg9[%225, %c0_91], %224 {strides = array<i32>} : memref<8x64xf32, #tpu.memory_space<vmem>>, vector<1x32xf32>,
    %227 = vector.extract_strided_slice %223 {offsets = [0, 32], sizes = [1, 32], strides = [1, 1]} : vector<1x64xf32> to vector<1x32xf32>
    %c7_i32_92 = arith.constant 7 : i32
    %228 = arith.subi %c7_i32_92, %c4_i32_83 : i32
    %229 = arith.index_cast %228 : i32 to index
    %c32_93 = arith.constant 32 : index
    %230 = vector.load %arg9[%229, %c32_93] : memref<8x64xf32, #tpu.memory_space<vmem>>, vector<1x32xf32>
    tpu.vector_store %arg9[%229, %c32_93], %227 {strides = array<i32>} : memref<8x64xf32, #tpu.memory_space<vmem>>, vector<1x32xf32>,
    %c5_i32_94 = arith.constant 5 : i32
    %231 = arith.index_cast %c5_i32_94 : i32 to index
    %c0_95 = arith.constant 0 : index
    %232 = vector.load %arg13[%231, %c0_95] : memref<8x256xf32, #tpu.memory_space<vmem>>, vector<1x256xf32>
    %c0_96 = arith.constant 0 : index
    %c0_97 = arith.constant 0 : index
    %233 = vector.load %arg3[%c0_96, %c0_97] : memref<64x256xf32, #tpu.memory_space<vmem>>, vector<64x256xf32>
    %cst_98 = arith.constant dense<0.000000e+00> : vector<1x256xf32>
    %234 = tpu.matmul %223, %233, %cst_98 {dimension_numbers = #tpu.dot_dimension_numbers<[1], [0], [0], [1], [0, 0, 1, 1], [], []>} : vector<1x64xf32>, vector<64x256xf32>, vector<1x256xf32> -> vector<1x256xf32>
    %235 = arith.addf %232, %234 : vector<1x256xf32>
    %236 = vector.extract_strided_slice %235 {offsets = [0, 0], sizes = [1, 192], strides = [1, 1]} : vector<1x256xf32> to vector<1x192xf32>
    %cst_99 = arith.constant 5.000000e-01 : f32
    %237 = vector.broadcast %cst_99 : f32 to vector<1x192xf32>
    %238 = arith.mulf %237, %236 : vector<1x192xf32>
    %239 = math.tanh %238 : vector<1x192xf32>
    %cst_100 = arith.constant 1.000000e+00 : f32
    %240 = vector.broadcast %cst_100 : f32 to vector<1x192xf32>
    %241 = arith.addf %239, %240 : vector<1x192xf32>
    %cst_101 = arith.constant 5.000000e-01 : f32
    %242 = vector.broadcast %cst_101 : f32 to vector<1x192xf32>
    %243 = arith.mulf %242, %241 : vector<1x192xf32>
    %244 = vector.extract_strided_slice %235 {offsets = [0, 192], sizes = [1, 64], strides = [1, 1]} : vector<1x256xf32> to vector<1x64xf32>
    %245 = math.tanh %244 : vector<1x64xf32>
    %246 = vector.extract_strided_slice %243 {offsets = [0, 0], sizes = [1, 64], strides = [1, 1]} : vector<1x192xf32> to vector<1x64xf32>
    %247 = vector.extract_strided_slice %243 {offsets = [0, 64], sizes = [1, 64], strides = [1, 1]} : vector<1x192xf32> to vector<1x64xf32>
    %248 = vector.extract_strided_slice %243 {offsets = [0, 128], sizes = [1, 64], strides = [1, 1]} : vector<1x192xf32> to vector<1x64xf32>
    %249 = arith.mulf %247, %221 : vector<1x64xf32>
    %250 = arith.mulf %246, %245 : vector<1x64xf32>
    %251 = arith.addf %249, %250 : vector<1x64xf32>
    %252 = math.tanh %251 : vector<1x64xf32>
    %253 = arith.mulf %248, %252 : vector<1x64xf32>
    %254 = vector.extract_strided_slice %253 {offsets = [0, 0], sizes = [1, 32], strides = [1, 1]} : vector<1x64xf32> to vector<1x32xf32>
    %255 = arith.index_cast %c5_i32_94 : i32 to index
    %c0_102 = arith.constant 0 : index
    %256 = vector.load %arg9[%255, %c0_102] : memref<8x64xf32, #tpu.memory_space<vmem>>, vector<1x32xf32>
    tpu.vector_store %arg9[%255, %c0_102], %254 {strides = array<i32>} : memref<8x64xf32, #tpu.memory_space<vmem>>, vector<1x32xf32>,
    %257 = vector.extract_strided_slice %253 {offsets = [0, 32], sizes = [1, 32], strides = [1, 1]} : vector<1x64xf32> to vector<1x32xf32>
    %c7_i32_103 = arith.constant 7 : i32
    %258 = arith.subi %c7_i32_103, %c5_i32_94 : i32
    %259 = arith.index_cast %258 : i32 to index
    %c32_104 = arith.constant 32 : index
    %260 = vector.load %arg9[%259, %c32_104] : memref<8x64xf32, #tpu.memory_space<vmem>>, vector<1x32xf32>
    tpu.vector_store %arg9[%259, %c32_104], %257 {strides = array<i32>} : memref<8x64xf32, #tpu.memory_space<vmem>>, vector<1x32xf32>,
    %c6_i32_105 = arith.constant 6 : i32
    %261 = arith.index_cast %c6_i32_105 : i32 to index
    %c0_106 = arith.constant 0 : index
    %262 = vector.load %arg13[%261, %c0_106] : memref<8x256xf32, #tpu.memory_space<vmem>>, vector<1x256xf32>
    %c0_107 = arith.constant 0 : index
    %c0_108 = arith.constant 0 : index
    %263 = vector.load %arg3[%c0_107, %c0_108] : memref<64x256xf32, #tpu.memory_space<vmem>>, vector<64x256xf32>
    %cst_109 = arith.constant dense<0.000000e+00> : vector<1x256xf32>
    %264 = tpu.matmul %253, %263, %cst_109 {dimension_numbers = #tpu.dot_dimension_numbers<[1], [0], [0], [1], [0, 0, 1, 1], [], []>} : vector<1x64xf32>, vector<64x256xf32>, vector<1x256xf32> -> vector<1x256xf32>
    %265 = arith.addf %262, %264 : vector<1x256xf32>
    %266 = vector.extract_strided_slice %265 {offsets = [0, 0], sizes = [1, 192], strides = [1, 1]} : vector<1x256xf32> to vector<1x192xf32>
    %cst_110 = arith.constant 5.000000e-01 : f32
    %267 = vector.broadcast %cst_110 : f32 to vector<1x192xf32>
    %268 = arith.mulf %267, %266 : vector<1x192xf32>
    %269 = math.tanh %268 : vector<1x192xf32>
    %cst_111 = arith.constant 1.000000e+00 : f32
    %270 = vector.broadcast %cst_111 : f32 to vector<1x192xf32>
    %271 = arith.addf %269, %270 : vector<1x192xf32>
    %cst_112 = arith.constant 5.000000e-01 : f32
    %272 = vector.broadcast %cst_112 : f32 to vector<1x192xf32>
    %273 = arith.mulf %272, %271 : vector<1x192xf32>
    %274 = vector.extract_strided_slice %265 {offsets = [0, 192], sizes = [1, 64], strides = [1, 1]} : vector<1x256xf32> to vector<1x64xf32>
    %275 = math.tanh %274 : vector<1x64xf32>
    %276 = vector.extract_strided_slice %273 {offsets = [0, 0], sizes = [1, 64], strides = [1, 1]} : vector<1x192xf32> to vector<1x64xf32>
    %277 = vector.extract_strided_slice %273 {offsets = [0, 64], sizes = [1, 64], strides = [1, 1]} : vector<1x192xf32> to vector<1x64xf32>
    %278 = vector.extract_strided_slice %273 {offsets = [0, 128], sizes = [1, 64], strides = [1, 1]} : vector<1x192xf32> to vector<1x64xf32>
    %279 = arith.mulf %277, %251 : vector<1x64xf32>
    %280 = arith.mulf %276, %275 : vector<1x64xf32>
    %281 = arith.addf %279, %280 : vector<1x64xf32>
    %282 = math.tanh %281 : vector<1x64xf32>
    %283 = arith.mulf %278, %282 : vector<1x64xf32>
    %284 = vector.extract_strided_slice %283 {offsets = [0, 0], sizes = [1, 32], strides = [1, 1]} : vector<1x64xf32> to vector<1x32xf32>
    %285 = arith.index_cast %c6_i32_105 : i32 to index
    %c0_113 = arith.constant 0 : index
    %286 = vector.load %arg9[%285, %c0_113] : memref<8x64xf32, #tpu.memory_space<vmem>>, vector<1x32xf32>
    tpu.vector_store %arg9[%285, %c0_113], %284 {strides = array<i32>} : memref<8x64xf32, #tpu.memory_space<vmem>>, vector<1x32xf32>,
    %287 = vector.extract_strided_slice %283 {offsets = [0, 32], sizes = [1, 32], strides = [1, 1]} : vector<1x64xf32> to vector<1x32xf32>
    %c7_i32_114 = arith.constant 7 : i32
    %288 = arith.subi %c7_i32_114, %c6_i32_105 : i32
    %289 = arith.index_cast %288 : i32 to index
    %c32_115 = arith.constant 32 : index
    %290 = vector.load %arg9[%289, %c32_115] : memref<8x64xf32, #tpu.memory_space<vmem>>, vector<1x32xf32>
    tpu.vector_store %arg9[%289, %c32_115], %287 {strides = array<i32>} : memref<8x64xf32, #tpu.memory_space<vmem>>, vector<1x32xf32>,
    %c7_i32_116 = arith.constant 7 : i32
    %291 = arith.index_cast %c7_i32_116 : i32 to index
    %c0_117 = arith.constant 0 : index
    %292 = vector.load %arg13[%291, %c0_117] : memref<8x256xf32, #tpu.memory_space<vmem>>, vector<1x256xf32>
    %c0_118 = arith.constant 0 : index
    %c0_119 = arith.constant 0 : index
    %293 = vector.load %arg3[%c0_118, %c0_119] : memref<64x256xf32, #tpu.memory_space<vmem>>, vector<64x256xf32>
    %cst_120 = arith.constant dense<0.000000e+00> : vector<1x256xf32>
    %294 = tpu.matmul %283, %293, %cst_120 {dimension_numbers = #tpu.dot_dimension_numbers<[1], [0], [0], [1], [0, 0, 1, 1], [], []>} : vector<1x64xf32>, vector<64x256xf32>, vector<1x256xf32> -> vector<1x256xf32>
    %295 = arith.addf %292, %294 : vector<1x256xf32>
    %296 = vector.extract_strided_slice %295 {offsets = [0, 0], sizes = [1, 192], strides = [1, 1]} : vector<1x256xf32> to vector<1x192xf32>
    %cst_121 = arith.constant 5.000000e-01 : f32
    %297 = vector.broadcast %cst_121 : f32 to vector<1x192xf32>
    %298 = arith.mulf %297, %296 : vector<1x192xf32>
    %299 = math.tanh %298 : vector<1x192xf32>
    %cst_122 = arith.constant 1.000000e+00 : f32
    %300 = vector.broadcast %cst_122 : f32 to vector<1x192xf32>
    %301 = arith.addf %299, %300 : vector<1x192xf32>
    %cst_123 = arith.constant 5.000000e-01 : f32
    %302 = vector.broadcast %cst_123 : f32 to vector<1x192xf32>
    %303 = arith.mulf %302, %301 : vector<1x192xf32>
    %304 = vector.extract_strided_slice %295 {offsets = [0, 192], sizes = [1, 64], strides = [1, 1]} : vector<1x256xf32> to vector<1x64xf32>
    %305 = math.tanh %304 : vector<1x64xf32>
    %306 = vector.extract_strided_slice %303 {offsets = [0, 0], sizes = [1, 64], strides = [1, 1]} : vector<1x192xf32> to vector<1x64xf32>
    %307 = vector.extract_strided_slice %303 {offsets = [0, 64], sizes = [1, 64], strides = [1, 1]} : vector<1x192xf32> to vector<1x64xf32>
    %308 = vector.extract_strided_slice %303 {offsets = [0, 128], sizes = [1, 64], strides = [1, 1]} : vector<1x192xf32> to vector<1x64xf32>
    %309 = arith.mulf %307, %281 : vector<1x64xf32>
    %310 = arith.mulf %306, %305 : vector<1x64xf32>
    %311 = arith.addf %309, %310 : vector<1x64xf32>
    %312 = math.tanh %311 : vector<1x64xf32>
    %313 = arith.mulf %308, %312 : vector<1x64xf32>
    %314 = vector.extract_strided_slice %313 {offsets = [0, 0], sizes = [1, 32], strides = [1, 1]} : vector<1x64xf32> to vector<1x32xf32>
    %315 = arith.index_cast %c7_i32_116 : i32 to index
    %c0_124 = arith.constant 0 : index
    %316 = vector.load %arg9[%315, %c0_124] : memref<8x64xf32, #tpu.memory_space<vmem>>, vector<1x32xf32>
    tpu.vector_store %arg9[%315, %c0_124], %314 {strides = array<i32>} : memref<8x64xf32, #tpu.memory_space<vmem>>, vector<1x32xf32>,
    %317 = vector.extract_strided_slice %313 {offsets = [0, 32], sizes = [1, 32], strides = [1, 1]} : vector<1x64xf32> to vector<1x32xf32>
    %c7_i32_125 = arith.constant 7 : i32
    %318 = arith.subi %c7_i32_125, %c7_i32_116 : i32
    %319 = arith.index_cast %318 : i32 to index
    %c32_126 = arith.constant 32 : index
    %320 = vector.load %arg9[%319, %c32_126] : memref<8x64xf32, #tpu.memory_space<vmem>>, vector<1x32xf32>
    tpu.vector_store %arg9[%319, %c32_126], %317 {strides = array<i32>} : memref<8x64xf32, #tpu.memory_space<vmem>>, vector<1x32xf32>,
    %c8_i32_127 = arith.constant 8 : i32
    %c7 = arith.constant 7 : index
    %c0_128 = arith.constant 0 : index
    %321 = vector.load %arg9[%c7, %c0_128] : memref<8x64xf32, #tpu.memory_space<vmem>>, vector<1x64xf32>
    %c0_129 = arith.constant 0 : index
    %c0_130 = arith.constant 0 : index
    %322 = vector.load %arg5[%c0_129, %c0_130] : memref<64x32xf32, #tpu.memory_space<vmem>>, vector<64x32xf32>
    %cst_131 = arith.constant dense<0.000000e+00> : vector<1x32xf32>
    %323 = tpu.matmul %321, %322, %cst_131 {dimension_numbers = #tpu.dot_dimension_numbers<[1], [0], [0], [1], [0, 0, 1, 1], [], []>} : vector<1x64xf32>, vector<64x32xf32>, vector<1x32xf32> -> vector<1x32xf32>
    %c0_132 = arith.constant 0 : index
    %c0_133 = arith.constant 0 : index
    %324 = vector.load %arg6[%c0_132, %c0_133] : memref<1x32xf32, #tpu.memory_space<vmem>>, vector<1x32xf32>
    %325 = arith.addf %323, %324 : vector<1x32xf32>
    %c0_134 = arith.constant 0 : index
    %c0_135 = arith.constant 0 : index
    %326 = vector.load %arg10[%c0_134, %c0_135] : memref<1x32xf32, #tpu.memory_space<vmem>>, vector<1x32xf32>
    tpu.vector_store %arg10[%c0_134, %c0_135], %325 {strides = array<i32>} : memref<1x32xf32, #tpu.memory_space<vmem>>, vector<1x32xf32>,
    %c0_136 = arith.constant 0 : index
    %c0_137 = arith.constant 0 : index
    %327 = vector.load %arg7[%c0_136, %c0_137] : memref<64x32xf32, #tpu.memory_space<vmem>>, vector<64x32xf32>
    %cst_138 = arith.constant dense<0.000000e+00> : vector<1x32xf32>
    %328 = tpu.matmul %311, %327, %cst_138 {dimension_numbers = #tpu.dot_dimension_numbers<[1], [0], [0], [1], [0, 0, 1, 1], [], []>} : vector<1x64xf32>, vector<64x32xf32>, vector<1x32xf32> -> vector<1x32xf32>
    %c0_139 = arith.constant 0 : index
    %c0_140 = arith.constant 0 : index
    %329 = vector.load %arg8[%c0_139, %c0_140] : memref<1x32xf32, #tpu.memory_space<vmem>>, vector<1x32xf32>
    %330 = arith.addf %328, %329 : vector<1x32xf32>
    %c0_141 = arith.constant 0 : index
    %c0_142 = arith.constant 0 : index
    %331 = vector.load %arg11[%c0_141, %c0_142] : memref<1x32xf32, #tpu.memory_space<vmem>>, vector<1x32xf32>
    tpu.vector_store %arg11[%c0_141, %c0_142], %330 {strides = array<i32>} : memref<1x32xf32, #tpu.memory_space<vmem>>, vector<1x32xf32>,
    return
  }
}

</mosaic_0001>

<llo_original>
// kernel: encoder_rnn_forward.1
$region0: #{encoder_rnn_forward.1}
  #allocation0 [shape = 'u32[]', space=smem, size = 0x4, offset = 0x4, fixed_abs, tag = 'smem constant byte address 0x4 - core index']
  #allocation1 [shape = 'u32[144,128]{1,0:T(1,128)}', space=vmem, size = 0x12000, scoped, tag = 'internal scratch']
  #allocation2 [shape = 'f32[8,32]{1,0:T(8,128)}', space=vmem, size = 0x1000, scoped, tag = 'scratch operand']
  #allocation3 [shape = 'f32[8,256]{1,0:T(8,128)}', space=vmem, size = 0x2000, scoped, tag = 'scratch operand']
  %s0 = inlined_call_operand.vmem [shape: s32[8], index: 0, kind: input, shape index: {}]
  %s1 = inlined_call_operand.vmem [shape: f32[1000,16], index: 1, kind: input, shape index: {}]
  %s2 = inlined_call_operand.vmem [shape: f32[32,256], index: 2, kind: input, shape index: {}]
  %s3 = inlined_call_operand.vmem [shape: f32[64,256], index: 3, kind: input, shape index: {}]
  %s4 = inlined_call_operand.vmem [shape: f32[1,256], index: 4, kind: input, shape index: {}]
  %s5 = inlined_call_operand.vmem [shape: f32[64,32], index: 5, kind: input, shape index: {}]
  %s6 = inlined_call_operand.vmem [shape: f32[1,32], index: 6, kind: input, shape index: {}]
  %s7 = inlined_call_operand.vmem [shape: f32[64,32], index: 7, kind: input, shape index: {}]
  %s8 = inlined_call_operand.vmem [shape: f32[1,32], index: 8, kind: input, shape index: {}]
  %s9 = inlined_call_operand.hbm [shape: f32[8,64], index: 9, kind: output, shape index: {0}]
  %s10 = inlined_call_operand.hbm [shape: f32[1,32], index: 10, kind: output, shape index: {1}]
  %s11 = inlined_call_operand.hbm [shape: f32[1,32], index: 11, kind: output, shape index: {2}]
  %12 = xla_tuple %s9, %s10, %s11
  %s13 = sld [smem:[#allocation0]]
  $region66: #{encoder_rnn_forward.1} parent=0
    _
  %s15 = ssub.s32 1, %s13
  %s16 = scalar_select 0, %s15, %s13
  $region1: #{encoder_rnn_forward.1} parent=0
    #allocation4 [shape = 'u8[512]{0}', space=smem, size = 0x200, scoped, tag = 'input window, operand 0, single buffered']
    #allocation5 [shape = 's32[1]{0}', space=sflag, size = 0x4, scoped, tag = 'scoped memory for encoder_rnn_forward.1']
    #allocation6 [shape = 's32[1]{0}', space=sflag, size = 0x4, scoped, tag = 'scoped memory for encoder_rnn_forward.1']
    #allocation7 [shape = 'u8[4096]{0}', space=vmem, size = 0x1000, scoped, tag = 'output window, operand 0, single buffered']
    #allocation8 [shape = 'u8[512]{0}', space=vmem, size = 0x400, scoped, tag = 'output window, operand 1, single buffered']
    #allocation9 [shape = 's32[1]{0}', space=sflag, size = 0x4, scoped, tag = 'scoped memory for encoder_rnn_forward.1']
    #allocation10 [shape = 'u8[512]{0}', space=vmem, size = 0x400, scoped, tag = 'output window, operand 2, single buffered']
    %17 = vsyncpa [#allocation6], 0
    %18 = vsyncpa [#allocation5], 0
    %19 = vsyncpa [#allocation9], 0
    // Predicated region
    $region2: #{encoder_rnn_forward.1} parent=1 // pred_check
      _
    $region3: #{encoder_rnn_forward.1} parent=1 // pred_check_branch
      %21 = sbr.rel (0) target = $region5
    $region4: #{encoder_rnn_forward.1} parent=1 // pred_region
      %s23 = ssub.s32 16, 16
      %24 = vsyncadd [#allocation6], %s23
      %s26 = sshll.u32 %s0, 4
      %s27 = int_to_ptr.vmem [resolvable:$true] %s26
      %29 = dma.vmem_to_smem %s27, 16, [#allocation4], [#allocation6]
    $region5: #{encoder_rnn_forward.1} parent=1 // pred_fallthru
      _
    // Predicated region
    $region6: #{encoder_rnn_forward.1} parent=1 // pred_check
      _
    $region7: #{encoder_rnn_forward.1} parent=1 // pred_check_branch
      %31 = sbr.rel (0) target = $region9
    $region8: #{encoder_rnn_forward.1} parent=1 // pred_region
      _
    $region9: #{encoder_rnn_forward.1} parent=1 // pred_fallthru
      _
    // Predicated region
    $region10: #{encoder_rnn_forward.1} parent=1 // pred_check
      _
    $region11: #{encoder_rnn_forward.1} parent=1 // pred_check_branch
      %33 = sbr.rel (0) target = $region13
    $region12: #{encoder_rnn_forward.1} parent=1 // pred_region
      _
    $region13: #{encoder_rnn_forward.1} parent=1 // pred_fallthru
      _
    // Predicated region
    $region14: #{encoder_rnn_forward.1} parent=1 // pred_check
      _
    $region15: #{encoder_rnn_forward.1} parent=1 // pred_check_branch
      %35 = sbr.rel (0) target = $region17
    $region16: #{encoder_rnn_forward.1} parent=1 // pred_region
      _
    $region17: #{encoder_rnn_forward.1} parent=1 // pred_fallthru
      _
    // Predicated region
    $region18: #{encoder_rnn_forward.1} parent=1 // pred_check
      _
    $region19: #{encoder_rnn_forward.1} parent=1 // pred_check_branch
      %37 = sbr.rel (0) target = $region21
    $region20: #{encoder_rnn_forward.1} parent=1 // pred_region
      _
    $region21: #{encoder_rnn_forward.1} parent=1 // pred_fallthru
      _
    // Predicated region
    $region22: #{encoder_rnn_forward.1} parent=1 // pred_check
      _
    $region23: #{encoder_rnn_forward.1} parent=1 // pred_check_branch
      %39 = sbr.rel (0) target = $region25
    $region24: #{encoder_rnn_forward.1} parent=1 // pred_region
      _
    $region25: #{encoder_rnn_forward.1} parent=1 // pred_fallthru
      _
    // Predicated region
    $region26: #{encoder_rnn_forward.1} parent=1 // pred_check
      _
    $region27: #{encoder_rnn_forward.1} parent=1 // pred_check_branch
      %41 = sbr.rel (0) target = $region29
    $region28: #{encoder_rnn_forward.1} parent=1 // pred_region
      _
    $region29: #{encoder_rnn_forward.1} parent=1 // pred_fallthru
      _
    // Predicated region
    $region30: #{encoder_rnn_forward.1} parent=1 // pred_check
      _
    $region31: #{encoder_rnn_forward.1} parent=1 // pred_check_branch
      %43 = sbr.rel (0) target = $region33
    $region32: #{encoder_rnn_forward.1} parent=1 // pred_region
      _
    $region33: #{encoder_rnn_forward.1} parent=1 // pred_fallthru
      _
    // Predicated region
    $region34: #{encoder_rnn_forward.1} parent=1 // pred_check
      _
    $region35: #{encoder_rnn_forward.1} parent=1 // pred_check_branch
      %45 = sbr.rel (0) target = $region37
    $region36: #{encoder_rnn_forward.1} parent=1 // pred_region
      _
    $region37: #{encoder_rnn_forward.1} parent=1 // pred_fallthru
      _
    // Predicated region
    $region38: #{encoder_rnn_forward.1} parent=1 // pred_check
      _
    $region39: #{encoder_rnn_forward.1} parent=1 // pred_check_branch
      %47 = sbr.rel (0) target = $region41
    $region40: #{encoder_rnn_forward.1} parent=1 // pred_region
      %48 = dma.done [#allocation6], 16
    $region41: #{encoder_rnn_forward.1} parent=1 // pred_fallthru
      _
    %49 = sfence
    %s50 = sld [smem:[#allocation4]]
    %s51 = scalar_lea.vmem %s1, %s50
    %v52 = vld [vmem:[%s51] sm:$0x1]
    %vm53 = vcmask 122880
    %54 = vst.msk [vmem:[#allocation2] sm:$0x1] %vm53, %v52
    %56 = vrot.lane.b32.xlu0 %v52, 16
    %v57 = vpop.permute.xlu0 %56
    %vm59 = vcmask 254080
    %60 = vst.msk [vmem:[#allocation2 + $0x7] sm:$0x1] %vm59, %v57
    %s61 = sld [smem:[#allocation4 + $0x1]]
    %s62 = scalar_lea.vmem %s1, %s61
    %v63 = vld [vmem:[%s62] sm:$0x1]
    %64 = vst.msk [vmem:[#allocation2 + $0x1] sm:$0x1] %vm53, %v63
    %66 = vrot.lane.b32.xlu0 %v63, 16
    %v67 = vpop.permute.xlu0 %66
    %69 = vst.msk [vmem:[#allocation2 + $0x6] sm:$0x1] %vm59, %v67
    %s70 = sld [smem:[#allocation4 + $0x2]]
    %s71 = scalar_lea.vmem %s1, %s70
    %v72 = vld [vmem:[%s71] sm:$0x1]
    %73 = vst.msk [vmem:[#allocation2 + $0x2] sm:$0x1] %vm53, %v72
    %75 = vrot.lane.b32.xlu0 %v72, 16
    %v76 = vpop.permute.xlu0 %75
    %78 = vst.msk [vmem:[#allocation2 + $0x5] sm:$0x1] %vm59, %v76
    %s79 = sld [smem:[#allocation4 + $0x3]]
    %s80 = scalar_lea.vmem %s1, %s79
    %v81 = vld [vmem:[%s80] sm:$0x1]
    %82 = vst.msk [vmem:[#allocation2 + $0x3] sm:$0x1] %vm53, %v81
    %84 = vrot.lane.b32.xlu0 %v81, 16
    %v85 = vpop.permute.xlu0 %84
    %87 = vst.msk [vmem:[#allocation2 + $0x4] sm:$0x1] %vm59, %v85
    %s88 = sld [smem:[#allocation4 + $0x4]]
    %s89 = scalar_lea.vmem %s1, %s88
    %v90 = vld [vmem:[%s89] sm:$0x1]
    %91 = vst.msk [vmem:[#allocation2 + $0x4] sm:$0x1] %vm53, %v90
    %93 = vrot.lane.b32.xlu0 %v90, 16
    %v94 = vpop.permute.xlu0 %93
    %96 = vst.msk [vmem:[#allocation2 + $0x3] sm:$0x1] %vm59, %v94
    %s97 = sld [smem:[#allocation4 + $0x5]]
    %s98 = scalar_lea.vmem %s1, %s97
    %v99 = vld [vmem:[%s98] sm:$0x1]
    %100 = vst.msk [vmem:[#allocation2 + $0x5] sm:$0x1] %vm53, %v99
    %102 = vrot.lane.b32.xlu0 %v99, 16
    %v103 = vpop.permute.xlu0 %102
    %105 = vst.msk [vmem:[#allocation2 + $0x2] sm:$0x1] %vm59, %v103
    %s106 = sld [smem:[#allocation4 + $0x6]]
    %s107 = scalar_lea.vmem %s1, %s106
    %v108 = vld [vmem:[%s107] sm:$0x1]
    %109 = vst.msk [vmem:[#allocation2 + $0x6] sm:$0x1] %vm53, %v108
    %111 = vrot.lane.b32.xlu0 %v108, 16
    %v112 = vpop.permute.xlu0 %111
    %114 = vst.msk [vmem:[#allocation2 + $0x1] sm:$0x1] %vm59, %v112
    %s115 = sld [smem:[#allocation4 + $0x7]]
    %s116 = scalar_lea.vmem %s1, %s115
    %v117 = vld [vmem:[%s116] sm:$0x1]
    %118 = vst.msk [vmem:[#allocation2 + $0x7] sm:$0x1] %vm53, %v117
    %120 = vrot.lane.b32.xlu0 %v117, 16
    %v121 = vpop.permute.xlu0 %120
    %123 = vst.msk [vmem:[#allocation2] sm:$0x1] %vm59, %v121
    %v124 = vld [vmem:[#allocation2] sm:$0xff]
    %v125 = vld [vmem:[%s2] sm:$0xff]
    %v126 = vld [vmem:[%s2 + $0x8] sm:$0xff]
    %v127 = vld [vmem:[%s2 + $0x10] sm:$0xff]
    %v128 = vld [vmem:[%s2 + $0x18] sm:$0xff]
    %v129 = vld [vmem:[%s2 + $0x20] sm:$0xff]
    %v130 = vld [vmem:[%s2 + $0x28] sm:$0xff]
    %v131 = vld [vmem:[%s2 + $0x30] sm:$0xff]
    %v132 = vld [vmem:[%s2 + $0x38] sm:$0xff]
    %v133 = vld [vmem:[%s4] sm:$0x3]
    %v135 = vlaneseq
    %v136 = vshrl.u32 %v135, 7
    %v137 = vsub.s32 0, %v136
    %v138 = vrot.slane %v133, %v137
    %v139 = vlaneseq
    %v140 = vshrl.u32 %v139, 7
    %v141 = vsub.s32 1, %v140
    %v142 = vrot.slane %v133, %v141
    %vm145 = vcmask 261120
    %v147 = vsel %vm145, %v124, 0
    %149 = vmatprep.subr.mxu0 %v126
    %150 = vmatpush1.msra.mxu0 %v125
    %151 = vmatprep.subr.mxu0 %v128
    %152 = vmatpush1.msra.mxu0 %v127
    %153 = vmatprep.subr.mxu0 %v130
    %154 = vmatpush1.msra.mxu0 %v129
    %155 = vmatprep.subr.mxu0 %v132
    %156 = vmatpush1.msra.mxu0 %v131
    %157 = vmatprep.subr.mxu0 0.0
    %158 = vmatpush1.msra.mxu0 0.0
    %159 = vmatprep.subr.mxu0 0.0
    %160 = vmatpush1.msra.mxu0 0.0
    %161 = vmatprep.subr.mxu0 0.0
    %162 = vmatpush1.msra.mxu0 0.0
    %163 = vmatprep.subr.mxu0 0.0
    %164 = vmatpush1.msra.mxu0 0.0
    %165 = vmatprep.subr.mxu0 0.0
    %166 = vmatpush1.msra.mxu0 0.0
    %167 = vmatprep.subr.mxu0 0.0
    %168 = vmatpush1.msra.mxu0 0.0
    %169 = vmatprep.subr.mxu0 0.0
    %170 = vmatpush1.msra.mxu0 0.0
    %171 = vmatprep.subr.mxu0 0.0
    %172 = vmatpush1.msra.mxu0 0.0
    %173 = vmatprep.subr.mxu0 0.0
    %174 = vmatpush1.msra.mxu0 0.0
    %175 = vmatprep.subr.mxu0 0.0
    %176 = vmatpush1.msra.mxu0 0.0
    %177 = vmatprep.subr.mxu0 0.0
    %178 = vmatpush1.msra.mxu0 0.0
    %179 = vmatprep.subr.mxu0 0.0
    %180 = vmatpush1.msra.mxu0 0.0
    %181 = vmatprep.subr.mxu0 0.0
    %182 = vmatpush1.msra.mxu0 0.0
    %183 = vmatprep.subr.mxu0 0.0
    %184 = vmatpush1.msra.mxu0 0.0
    %185 = vmatprep.subr.mxu0 0.0
    %186 = vmatpush1.msra.mxu0 0.0
    %187 = vmatprep.subr.mxu0 0.0
    %188 = vmatpush1.msra.mxu0 0.0
    %189 = vmatprep.subr.mxu0 0.0
    %190 = vmatpush1.msra.mxu0 0.0
    %191 = vmatprep.subr.mxu0 0.0
    %192 = vmatpush1.msra.mxu0 0.0
    %193 = vmatprep.subr.mxu0 0.0
    %194 = vmatpush1.msra.mxu0 0.0
    %195 = vmatprep.subr.mxu0 0.0
    %196 = vmatpush1.msra.mxu0 0.0
    %197 = vmatprep.subr.mxu0 0.0
    %198 = vmatpush1.msra.mxu0 0.0
    %199 = vmatprep.subr.mxu0 0.0
    %200 = vmatpush1.msra.mxu0 0.0
    %201 = vmatprep.subr.mxu0 0.0
    %202 = vmatpush1.msra.mxu0 0.0
    %203 = vmatprep.subr.mxu0 0.0
    %204 = vmatpush1.msra.mxu0 0.0
    %205 = vmatprep.subr.mxu0 0.0
    %206 = vmatpush1.msra.mxu0 0.0
    %207 = vmatprep.subr.mxu0 0.0
    %208 = vmatpush1.msra.mxu0 0.0
    %209 = vmatprep.subr.mxu0 0.0
    %210 = vmatpush1.msra.mxu0 0.0
    %211 = vmatprep.subr.mxu0 0.0
    %212 = vmatpush1.msra.mxu0 0.0
    %213 = vmatprep.mubr.f32.mxu0 0.0
    %214 = vmatmul.mubr.f32.gmra.mrb[0].mxu0 %v147
    %v215 = vpop.f32.mrb[0].mxu0
    %v216 = vadd.f32 %v138, %v215
    %v217 = vpop.f32.mrb[0].mxu0
    %v218 = vadd.f32 %v142, %v217
    %219 = vdwg.mxu0
    %220 = vst [vmem:[#allocation3] sm:$0xff] %v216
    %221 = vst [vmem:[#allocation3 + $0x8] sm:$0xff] %v218
    %v222 = vld [vmem:[#allocation3] ss:$8 sm:$0x3]
    %v223 = vld [vmem:[%s3] sm:$0xff]
    %v224 = vld [vmem:[%s3 + $0x8] sm:$0xff]
    %v225 = vld [vmem:[%s3 + $0x10] sm:$0xff]
    %v226 = vld [vmem:[%s3 + $0x18] sm:$0xff]
    %v227 = vld [vmem:[%s3 + $0x20] sm:$0xff]
    %v228 = vld [vmem:[%s3 + $0x28] sm:$0xff]
    %v229 = vld [vmem:[%s3 + $0x30] sm:$0xff]
    %v230 = vld [vmem:[%s3 + $0x38] sm:$0xff]
    %v231 = vld [vmem:[%s3 + $0x40] sm:$0xff]
    %v232 = vld [vmem:[%s3 + $0x48] sm:$0xff]
    %v233 = vld [vmem:[%s3 + $0x50] sm:$0xff]
    %v234 = vld [vmem:[%s3 + $0x58] sm:$0xff]
    %v235 = vld [vmem:[%s3 + $0x60] sm:$0xff]
    %v236 = vld [vmem:[%s3 + $0x68] sm:$0xff]
    %v237 = vld [vmem:[%s3 + $0x70] sm:$0xff]
    %v238 = vld [vmem:[%s3 + $0x78] sm:$0xff]
    %vm239 = vcmask 523264
    %v241 = vsel %vm239, 0.0, 0
    %243 = vmatprep.subr.mxu0 %v224
    %244 = vmatpush1.msra.mxu0 %v223
    %245 = vmatprep.subr.mxu0 %v226
    %246 = vmatpush1.msra.mxu0 %v225
    %247 = vmatprep.subr.mxu0 %v228
    %248 = vmatpush1.msra.mxu0 %v227
    %249 = vmatprep.subr.mxu0 %v230
    %250 = vmatpush1.msra.mxu0 %v229
    %251 = vmatprep.subr.mxu0 %v232
    %252 = vmatpush1.msra.mxu0 %v231
    %253 = vmatprep.subr.mxu0 %v234
    %254 = vmatpush1.msra.mxu0 %v233
    %255 = vmatprep.subr.mxu0 %v236
    %256 = vmatpush1.msra.mxu0 %v235
    %257 = vmatprep.subr.mxu0 %v238
    %258 = vmatpush1.msra.mxu0 %v237
    %259 = vmatprep.subr.mxu0 0.0
    %260 = vmatpush1.msra.mxu0 0.0
    %261 = vmatprep.subr.mxu0 0.0
    %262 = vmatpush1.msra.mxu0 0.0
    %263 = vmatprep.subr.mxu0 0.0
    %264 = vmatpush1.msra.mxu0 0.0
    %265 = vmatprep.subr.mxu0 0.0
    %266 = vmatpush1.msra.mxu0 0.0
    %267 = vmatprep.subr.mxu0 0.0
    %268 = vmatpush1.msra.mxu0 0.0
    %269 = vmatprep.subr.mxu0 0.0
    %270 = vmatpush1.msra.mxu0 0.0
    %271 = vmatprep.subr.mxu0 0.0
    %272 = vmatpush1.msra.mxu0 0.0
    %273 = vmatprep.subr.mxu0 0.0
    %274 = vmatpush1.msra.mxu0 0.0
    %275 = vmatprep.subr.mxu0 0.0
    %276 = vmatpush1.msra.mxu0 0.0
    %277 = vmatprep.subr.mxu0 0.0
    %278 = vmatpush1.msra.mxu0 0.0
    %279 = vmatprep.subr.mxu0 0.0
    %280 = vmatpush1.msra.mxu0 0.0
    %281 = vmatprep.subr.mxu0 0.0
    %282 = vmatpush1.msra.mxu0 0.0
    %283 = vmatprep.subr.mxu0 0.0
    %284 = vmatpush1.msra.mxu0 0.0
    %285 = vmatprep.subr.mxu0 0.0
    %286 = vmatpush1.msra.mxu0 0.0
    %287 = vmatprep.subr.mxu0 0.0
    %288 = vmatpush1.msra.mxu0 0.0
    %289 = vmatprep.subr.mxu0 0.0
    %290 = vmatpush1.msra.mxu0 0.0
    %291 = vmatprep.subr.mxu0 0.0
    %292 = vmatpush1.msra.mxu0 0.0
    %293 = vmatprep.subr.mxu0 0.0
    %294 = vmatpush1.msra.mxu0 0.0
    %295 = vmatprep.subr.mxu0 0.0
    %296 = vmatpush1.msra.mxu0 0.0
    %297 = vmatprep.subr.mxu0 0.0
    %298 = vmatpush1.msra.mxu0 0.0
    %299 = vmatprep.subr.mxu0 0.0
    %300 = vmatpush1.msra.mxu0 0.0
    %301 = vmatprep.subr.mxu0 0.0
    %302 = vmatpush1.msra.mxu0 0.0
    %303 = vmatprep.subr.mxu0 0.0
    %304 = vmatpush1.msra.mxu0 0.0
    %305 = vmatprep.subr.mxu0 0.0
    %306 = vmatpush1.msra.mxu0 0.0
    %307 = vmatprep.mubr.f32.mxu0 0.0
    %308 = vmatmul.mubr.f32.gmra.mrb[0].mxu0 %v241
    %v309 = vpop.f32.mrb[0].mxu0
    %v310 = vadd.f32 0.0, %v309
    %v311 = vpop.f32.mrb[0].mxu0
    %v312 = vadd.f32 0.0, %v311
    %313 = vdwg.mxu0
    %v316 = vcombine.low %v310, %v312
    %v318 = vunpack.c.l.s4 1966171168
    %v319 = vunpack.c.0.s8 %v318
    %v320 = vlaneseq
    %v321 = vshrl.u32 %v320, 7
    %v322 = vsub.s32 %v319, %v321
    %v323 = vrot.slane %v316, %v322
    %v325 = vunpack.c.l.s4 1966171168
    %v326 = vunpack.c.0.s8 %v325
    %v327 = vlaneseq
    %v328 = vshrl.u32 %v327, 7
    %v329 = vsub.s32 %v326, %v328
    %v330 = vrot.slane %v323, %v329
    %v332 = vadd.f32 %v222, %v330
    %v333 = vmul.f32 %v332, 0.5
    %v334 = vtanh.pop %v333
    %v335 = vadd.f32 %v334, 1.0
    %v336 = vmul.f32 %v335, 0.5
    %338 = vrot.lane.b32.xlu0 %v332, 64
    %v339 = vpop.permute.xlu0 %338
    %v340 = vrot.slane %v339, 1
    %v342 = vtanh.pop %v340
    %v343 = vmul.f32 %v336, 0.0
    %v344 = vmul.f32 %v336, %v342
    %346 = vrot.lane.b32.xlu0 %v344, 64
    %v347 = vpop.permute.xlu0 %346
    %v349 = vadd.f32 %v343, %v347
    %v350 = vtanh.pop %v349
    %v352 = vrot.slane %v336, 1
    %355 = vrot.lane.b32.xlu0 %v350, 64
    %v356 = vpop.permute.xlu0 %355
    %v358 = vmul.f32 %v352, %v356
    %vm359 = vcmask 253952
    %360 = vst.msk [vmem:[#allocation7] sm:$0x1] %vm359, %v358
    %vm361 = vcmask 516352
    %362 = vst.msk [vmem:[#allocation7 + $0x7] sm:$0x1] %vm361, %v358
    %s363 = scalar_lea.vmem [#allocation3], 1
    %v364 = vld [vmem:[%s363] ss:$8 sm:$0x3]
    %v365 = vld [vmem:[%s3] sm:$0xff]
    %v366 = vld [vmem:[%s3 + $0x8] sm:$0xff]
    %v367 = vld [vmem:[%s3 + $0x10] sm:$0xff]
    %v368 = vld [vmem:[%s3 + $0x18] sm:$0xff]
    %v369 = vld [vmem:[%s3 + $0x20] sm:$0xff]
    %v370 = vld [vmem:[%s3 + $0x28] sm:$0xff]
    %v371 = vld [vmem:[%s3 + $0x30] sm:$0xff]
    %v372 = vld [vmem:[%s3 + $0x38] sm:$0xff]
    %v373 = vld [vmem:[%s3 + $0x40] sm:$0xff]
    %v374 = vld [vmem:[%s3 + $0x48] sm:$0xff]
    %v375 = vld [vmem:[%s3 + $0x50] sm:$0xff]
    %v376 = vld [vmem:[%s3 + $0x58] sm:$0xff]
    %v377 = vld [vmem:[%s3 + $0x60] sm:$0xff]
    %v378 = vld [vmem:[%s3 + $0x68] sm:$0xff]
    %v379 = vld [vmem:[%s3 + $0x70] sm:$0xff]
    %v380 = vld [vmem:[%s3 + $0x78] sm:$0xff]
    %v382 = vsel %vm239, %v358, 0
    %384 = vmatprep.subr.mxu0 %v366
    %385 = vmatpush1.msra.mxu0 %v365
    %386 = vmatprep.subr.mxu0 %v368
    %387 = vmatpush1.msra.mxu0 %v367
    %388 = vmatprep.subr.mxu0 %v370
    %389 = vmatpush1.msra.mxu0 %v369
    %390 = vmatprep.subr.mxu0 %v372
    %391 = vmatpush1.msra.mxu0 %v371
    %392 = vmatprep.subr.mxu0 %v374
    %393 = vmatpush1.msra.mxu0 %v373
    %394 = vmatprep.subr.mxu0 %v376
    %395 = vmatpush1.msra.mxu0 %v375
    %396 = vmatprep.subr.mxu0 %v378
    %397 = vmatpush1.msra.mxu0 %v377
    %398 = vmatprep.subr.mxu0 %v380
    %399 = vmatpush1.msra.mxu0 %v379
    %400 = vmatprep.subr.mxu0 0.0
    %401 = vmatpush1.msra.mxu0 0.0
    %402 = vmatprep.subr.mxu0 0.0
    %403 = vmatpush1.msra.mxu0 0.0
    %404 = vmatprep.subr.mxu0 0.0
    %405 = vmatpush1.msra.mxu0 0.0
    %406 = vmatprep.subr.mxu0 0.0
    %407 = vmatpush1.msra.mxu0 0.0
    %408 = vmatprep.subr.mxu0 0.0
    %409 = vmatpush1.msra.mxu0 0.0
    %410 = vmatprep.subr.mxu0 0.0
    %411 = vmatpush1.msra.mxu0 0.0
    %412 = vmatprep.subr.mxu0 0.0
    %413 = vmatpush1.msra.mxu0 0.0
    %414 = vmatprep.subr.mxu0 0.0
    %415 = vmatpush1.msra.mxu0 0.0
    %416 = vmatprep.subr.mxu0 0.0
    %417 = vmatpush1.msra.mxu0 0.0
    %418 = vmatprep.subr.mxu0 0.0
    %419 = vmatpush1.msra.mxu0 0.0
    %420 = vmatprep.subr.mxu0 0.0
    %421 = vmatpush1.msra.mxu0 0.0
    %422 = vmatprep.subr.mxu0 0.0
    %423 = vmatpush1.msra.mxu0 0.0
    %424 = vmatprep.subr.mxu0 0.0
    %425 = vmatpush1.msra.mxu0 0.0
    %426 = vmatprep.subr.mxu0 0.0
    %427 = vmatpush1.msra.mxu0 0.0
    %428 = vmatprep.subr.mxu0 0.0
    %429 = vmatpush1.msra.mxu0 0.0
    %430 = vmatprep.subr.mxu0 0.0
    %431 = vmatpush1.msra.mxu0 0.0
    %432 = vmatprep.subr.mxu0 0.0
    %433 = vmatpush1.msra.mxu0 0.0
    %434 = vmatprep.subr.mxu0 0.0
    %435 = vmatpush1.msra.mxu0 0.0
    %436 = vmatprep.subr.mxu0 0.0
    %437 = vmatpush1.msra.mxu0 0.0
    %438 = vmatprep.subr.mxu0 0.0
    %439 = vmatpush1.msra.mxu0 0.0
    %440 = vmatprep.subr.mxu0 0.0
    %441 = vmatpush1.msra.mxu0 0.0
    %442 = vmatprep.subr.mxu0 0.0
    %443 = vmatpush1.msra.mxu0 0.0
    %444 = vmatprep.subr.mxu0 0.0
    %445 = vmatpush1.msra.mxu0 0.0
    %446 = vmatprep.subr.mxu0 0.0
    %447 = vmatpush1.msra.mxu0 0.0
    %448 = vmatprep.mubr.f32.mxu0 0.0
    %449 = vmatmul.mubr.f32.gmra.mrb[0].mxu0 %v382
    %v450 = vpop.f32.mrb[0].mxu0
    %v451 = vadd.f32 0.0, %v450
    %v452 = vpop.f32.mrb[0].mxu0
    %v453 = vadd.f32 0.0, %v452
    %454 = vdwg.mxu0
    %v457 = vcombine.low %v451, %v453
    %v459 = vunpack.c.l.s4 1966171168
    %v460 = vunpack.c.0.s8 %v459
    %v461 = vlaneseq
    %v462 = vshrl.u32 %v461, 7
    %v463 = vsub.s32 %v460, %v462
    %v464 = vrot.slane %v457, %v463
    %v466 = vunpack.c.l.s4 1966171168
    %v467 = vunpack.c.0.s8 %v466
    %v468 = vlaneseq
    %v469 = vshrl.u32 %v468, 7
    %v470 = vsub.s32 %v467, %v469
    %v471 = vrot.slane %v464, %v470
    %v473 = vadd.f32 %v364, %v471
    %v474 = vmul.f32 %v473, 0.5
    %v475 = vtanh.pop %v474
    %v476 = vadd.f32 %v475, 1.0
    %v477 = vmul.f32 %v476, 0.5
    %479 = vrot.lane.b32.xlu0 %v473, 64
    %v480 = vpop.permute.xlu0 %479
    %v481 = vrot.slane %v480, 1
    %v483 = vtanh.pop %v481
    %v484 = vmul.f32 %v477, %v349
    %v485 = vmul.f32 %v477, %v483
    %487 = vrot.lane.b32.xlu0 %v485, 64
    %v488 = vpop.permute.xlu0 %487
    %v490 = vadd.f32 %v484, %v488
    %v491 = vtanh.pop %v490
    %v493 = vrot.slane %v477, 1
    %496 = vrot.lane.b32.xlu0 %v491, 64
    %v497 = vpop.permute.xlu0 %496
    %v499 = vmul.f32 %v493, %v497
    %500 = vst.msk [vmem:[#allocation7 + $0x1] sm:$0x1] %vm359, %v499
    %501 = vst.msk [vmem:[#allocation7 + $0x6] sm:$0x1] %vm361, %v499
    %s502 = scalar_lea.vmem [#allocation3], 2
    %v503 = vld [vmem:[%s502] ss:$8 sm:$0x3]
    %v504 = vld [vmem:[%s3] sm:$0xff]
    %v505 = vld [vmem:[%s3 + $0x8] sm:$0xff]
    %v506 = vld [vmem:[%s3 + $0x10] sm:$0xff]
    %v507 = vld [vmem:[%s3 + $0x18] sm:$0xff]
    %v508 = vld [vmem:[%s3 + $0x20] sm:$0xff]
    %v509 = vld [vmem:[%s3 + $0x28] sm:$0xff]
    %v510 = vld [vmem:[%s3 + $0x30] sm:$0xff]
    %v511 = vld [vmem:[%s3 + $0x38] sm:$0xff]
    %v512 = vld [vmem:[%s3 + $0x40] sm:$0xff]
    %v513 = vld [vmem:[%s3 + $0x48] sm:$0xff]
    %v514 = vld [vmem:[%s3 + $0x50] sm:$0xff]
    %v515 = vld [vmem:[%s3 + $0x58] sm:$0xff]
    %v516 = vld [vmem:[%s3 + $0x60] sm:$0xff]
    %v517 = vld [vmem:[%s3 + $0x68] sm:$0xff]
    %v518 = vld [vmem:[%s3 + $0x70] sm:$0xff]
    %v519 = vld [vmem:[%s3 + $0x78] sm:$0xff]
    %v521 = vsel %vm239, %v499, 0
    %523 = vmatprep.subr.mxu0 %v505
    %524 = vmatpush1.msra.mxu0 %v504
    %525 = vmatprep.subr.mxu0 %v507
    %526 = vmatpush1.msra.mxu0 %v506
    %527 = vmatprep.subr.mxu0 %v509
    %528 = vmatpush1.msra.mxu0 %v508
    %529 = vmatprep.subr.mxu0 %v511
    %530 = vmatpush1.msra.mxu0 %v510
    %531 = vmatprep.subr.mxu0 %v513
    %532 = vmatpush1.msra.mxu0 %v512
    %533 = vmatprep.subr.mxu0 %v515
    %534 = vmatpush1.msra.mxu0 %v514
    %535 = vmatprep.subr.mxu0 %v517
    %536 = vmatpush1.msra.mxu0 %v516
    %537 = vmatprep.subr.mxu0 %v519
    %538 = vmatpush1.msra.mxu0 %v518
    %539 = vmatprep.subr.mxu0 0.0
    %540 = vmatpush1.msra.mxu0 0.0
    %541 = vmatprep.subr.mxu0 0.0
    %542 = vmatpush1.msra.mxu0 0.0
    %543 = vmatprep.subr.mxu0 0.0
    %544 = vmatpush1.msra.mxu0 0.0
    %545 = vmatprep.subr.mxu0 0.0
    %546 = vmatpush1.msra.mxu0 0.0
    %547 = vmatprep.subr.mxu0 0.0
    %548 = vmatpush1.msra.mxu0 0.0
    %549 = vmatprep.subr.mxu0 0.0
    %550 = vmatpush1.msra.mxu0 0.0
    %551 = vmatprep.subr.mxu0 0.0
    %552 = vmatpush1.msra.mxu0 0.0
    %553 = vmatprep.subr.mxu0 0.0
    %554 = vmatpush1.msra.mxu0 0.0
    %555 = vmatprep.subr.mxu0 0.0
    %556 = vmatpush1.msra.mxu0 0.0
    %557 = vmatprep.subr.mxu0 0.0
    %558 = vmatpush1.msra.mxu0 0.0
    %559 = vmatprep.subr.mxu0 0.0
    %560 = vmatpush1.msra.mxu0 0.0
    %561 = vmatprep.subr.mxu0 0.0
    %562 = vmatpush1.msra.mxu0 0.0
    %563 = vmatprep.subr.mxu0 0.0
    %564 = vmatpush1.msra.mxu0 0.0
    %565 = vmatprep.subr.mxu0 0.0
    %566 = vmatpush1.msra.mxu0 0.0
    %567 = vmatprep.subr.mxu0 0.0
    %568 = vmatpush1.msra.mxu0 0.0
    %569 = vmatprep.subr.mxu0 0.0
    %570 = vmatpush1.msra.mxu0 0.0
    %571 = vmatprep.subr.mxu0 0.0
    %572 = vmatpush1.msra.mxu0 0.0
    %573 = vmatprep.subr.mxu0 0.0
    %574 = vmatpush1.msra.mxu0 0.0
    %575 = vmatprep.subr.mxu0 0.0
    %576 = vmatpush1.msra.mxu0 0.0
    %577 = vmatprep.subr.mxu0 0.0
    %578 = vmatpush1.msra.mxu0 0.0
    %579 = vmatprep.subr.mxu0 0.0
    %580 = vmatpush1.msra.mxu0 0.0
    %581 = vmatprep.subr.mxu0 0.0
    %582 = vmatpush1.msra.mxu0 0.0
    %583 = vmatprep.subr.mxu0 0.0
    %584 = vmatpush1.msra.mxu0 0.0
    %585 = vmatprep.subr.mxu0 0.0
    %586 = vmatpush1.msra.mxu0 0.0
    %587 = vmatprep.mubr.f32.mxu0 0.0
    %588 = vmatmul.mubr.f32.gmra.mrb[0].mxu0 %v521
    %v589 = vpop.f32.mrb[0].mxu0
    %v590 = vadd.f32 0.0, %v589
    %v591 = vpop.f32.mrb[0].mxu0
    %v592 = vadd.f32 0.0, %v591
    %593 = vdwg.mxu0
    %v596 = vcombine.low %v590, %v592
    %v598 = vunpack.c.l.s4 1966171168
    %v599 = vunpack.c.0.s8 %v598
    %v600 = vlaneseq
    %v601 = vshrl.u32 %v600, 7
    %v602 = vsub.s32 %v599, %v601
    %v603 = vrot.slane %v596, %v602
    %v605 = vunpack.c.l.s4 1966171168
    %v606 = vunpack.c.0.s8 %v605
    %v607 = vlaneseq
    %v608 = vshrl.u32 %v607, 7
    %v609 = vsub.s32 %v606, %v608
    %v610 = vrot.slane %v603, %v609
    %v612 = vadd.f32 %v503, %v610
    %v613 = vmul.f32 %v612, 0.5
    %v614 = vtanh.pop %v613
    %v615 = vadd.f32 %v614, 1.0
    %v616 = vmul.f32 %v615, 0.5
    %618 = vrot.lane.b32.xlu0 %v612, 64
    %v619 = vpop.permute.xlu0 %618
    %v620 = vrot.slane %v619, 1
    %v622 = vtanh.pop %v620
    %v623 = vmul.f32 %v616, %v490
    %v624 = vmul.f32 %v616, %v622
    %626 = vrot.lane.b32.xlu0 %v624, 64
    %v627 = vpop.permute.xlu0 %626
    %v629 = vadd.f32 %v623, %v627
    %v630 = vtanh.pop %v629
    %v632 = vrot.slane %v616, 1
    %635 = vrot.lane.b32.xlu0 %v630, 64
    %v636 = vpop.permute.xlu0 %635
    %v638 = vmul.f32 %v632, %v636
    %639 = vst.msk [vmem:[#allocation7 + $0x2] sm:$0x1] %vm359, %v638
    %640 = vst.msk [vmem:[#allocation7 + $0x5] sm:$0x1] %vm361, %v638
    %s641 = scalar_lea.vmem [#allocation3], 3
    %v642 = vld [vmem:[%s641] ss:$8 sm:$0x3]
    %v643 = vld [vmem:[%s3] sm:$0xff]
    %v644 = vld [vmem:[%s3 + $0x8] sm:$0xff]
    %v645 = vld [vmem:[%s3 + $0x10] sm:$0xff]
    %v646 = vld [vmem:[%s3 + $0x18] sm:$0xff]
    %v647 = vld [vmem:[%s3 + $0x20] sm:$0xff]
    %v648 = vld [vmem:[%s3 + $0x28] sm:$0xff]
    %v649 = vld [vmem:[%s3 + $0x30] sm:$0xff]
    %v650 = vld [vmem:[%s3 + $0x38] sm:$0xff]
    %v651 = vld [vmem:[%s3 + $0x40] sm:$0xff]
    %v652 = vld [vmem:[%s3 + $0x48] sm:$0xff]
    %v653 = vld [vmem:[%s3 + $0x50] sm:$0xff]
    %v654 = vld [vmem:[%s3 + $0x58] sm:$0xff]
    %v655 = vld [vmem:[%s3 + $0x60] sm:$0xff]
    %v656 = vld [vmem:[%s3 + $0x68] sm:$0xff]
    %v657 = vld [vmem:[%s3 + $0x70] sm:$0xff]
    %v658 = vld [vmem:[%s3 + $0x78] sm:$0xff]
    %v660 = vsel %vm239, %v638, 0
    %662 = vmatprep.subr.mxu0 %v644
    %663 = vmatpush1.msra.mxu0 %v643
    %664 = vmatprep.subr.mxu0 %v646
    %665 = vmatpush1.msra.mxu0 %v645
    %666 = vmatprep.subr.mxu0 %v648
    %667 = vmatpush1.msra.mxu0 %v647
    %668 = vmatprep.subr.mxu0 %v650
    %669 = vmatpush1.msra.mxu0 %v649
    %670 = vmatprep.subr.mxu0 %v652
    %671 = vmatpush1.msra.mxu0 %v651
    %672 = vmatprep.subr.mxu0 %v654
    %673 = vmatpush1.msra.mxu0 %v653
    %674 = vmatprep.subr.mxu0 %v656
    %675 = vmatpush1.msra.mxu0 %v655
    %676 = vmatprep.subr.mxu0 %v658
    %677 = vmatpush1.msra.mxu0 %v657
    %678 = vmatprep.subr.mxu0 0.0
    %679 = vmatpush1.msra.mxu0 0.0
    %680 = vmatprep.subr.mxu0 0.0
    %681 = vmatpush1.msra.mxu0 0.0
    %682 = vmatprep.subr.mxu0 0.0
    %683 = vmatpush1.msra.mxu0 0.0
    %684 = vmatprep.subr.mxu0 0.0
    %685 = vmatpush1.msra.mxu0 0.0
    %686 = vmatprep.subr.mxu0 0.0
    %687 = vmatpush1.msra.mxu0 0.0
    %688 = vmatprep.subr.mxu0 0.0
    %689 = vmatpush1.msra.mxu0 0.0
    %690 = vmatprep.subr.mxu0 0.0
    %691 = vmatpush1.msra.mxu0 0.0
    %692 = vmatprep.subr.mxu0 0.0
    %693 = vmatpush1.msra.mxu0 0.0
    %694 = vmatprep.subr.mxu0 0.0
    %695 = vmatpush1.msra.mxu0 0.0
    %696 = vmatprep.subr.mxu0 0.0
    %697 = vmatpush1.msra.mxu0 0.0
    %698 = vmatprep.subr.mxu0 0.0
    %699 = vmatpush1.msra.mxu0 0.0
    %700 = vmatprep.subr.mxu0 0.0
    %701 = vmatpush1.msra.mxu0 0.0
    %702 = vmatprep.subr.mxu0 0.0
    %703 = vmatpush1.msra.mxu0 0.0
    %704 = vmatprep.subr.mxu0 0.0
    %705 = vmatpush1.msra.mxu0 0.0
    %706 = vmatprep.subr.mxu0 0.0
    %707 = vmatpush1.msra.mxu0 0.0
    %708 = vmatprep.subr.mxu0 0.0
    %709 = vmatpush1.msra.mxu0 0.0
    %710 = vmatprep.subr.mxu0 0.0
    %711 = vmatpush1.msra.mxu0 0.0
    %712 = vmatprep.subr.mxu0 0.0
    %713 = vmatpush1.msra.mxu0 0.0
    %714 = vmatprep.subr.mxu0 0.0
    %715 = vmatpush1.msra.mxu0 0.0
    %716 = vmatprep.subr.mxu0 0.0
    %717 = vmatpush1.msra.mxu0 0.0
    %718 = vmatprep.subr.mxu0 0.0
    %719 = vmatpush1.msra.mxu0 0.0
    %720 = vmatprep.subr.mxu0 0.0
    %721 = vmatpush1.msra.mxu0 0.0
    %722 = vmatprep.subr.mxu0 0.0
    %723 = vmatpush1.msra.mxu0 0.0
    %724 = vmatprep.subr.mxu0 0.0
    %725 = vmatpush1.msra.mxu0 0.0
    %726 = vmatprep.mubr.f32.mxu0 0.0
    %727 = vmatmul.mubr.f32.gmra.mrb[0].mxu0 %v660
    %v728 = vpop.f32.mrb[0].mxu0
    %v729 = vadd.f32 0.0, %v728
    %v730 = vpop.f32.mrb[0].mxu0
    %v731 = vadd.f32 0.0, %v730
    %732 = vdwg.mxu0
    %v735 = vcombine.low %v729, %v731
    %v737 = vunpack.c.l.s4 1966171168
    %v738 = vunpack.c.0.s8 %v737
    %v739 = vlaneseq
    %v740 = vshrl.u32 %v739, 7
    %v741 = vsub.s32 %v738, %v740
    %v742 = vrot.slane %v735, %v741
    %v744 = vunpack.c.l.s4 1966171168
    %v745 = vunpack.c.0.s8 %v744
    %v746 = vlaneseq
    %v747 = vshrl.u32 %v746, 7
    %v748 = vsub.s32 %v745, %v747
    %v749 = vrot.slane %v742, %v748
    %v751 = vadd.f32 %v642, %v749
    %v752 = vmul.f32 %v751, 0.5
    %v753 = vtanh.pop %v752
    %v754 = vadd.f32 %v753, 1.0
    %v755 = vmul.f32 %v754, 0.5
    %757 = vrot.lane.b32.xlu0 %v751, 64
    %v758 = vpop.permute.xlu0 %757
    %v759 = vrot.slane %v758, 1
    %v761 = vtanh.pop %v759
    %v762 = vmul.f32 %v755, %v629
    %v763 = vmul.f32 %v755, %v761
    %765 = vrot.lane.b32.xlu0 %v763, 64
    %v766 = vpop.permute.xlu0 %765
    %v768 = vadd.f32 %v762, %v766
    %v769 = vtanh.pop %v768
    %v771 = vrot.slane %v755, 1
    %774 = vrot.lane.b32.xlu0 %v769, 64
    %v775 = vpop.permute.xlu0 %774
    %v777 = vmul.f32 %v771, %v775
    %778 = vst.msk [vmem:[#allocation7 + $0x3] sm:$0x1] %vm359, %v777
    %779 = vst.msk [vmem:[#allocation7 + $0x4] sm:$0x1] %vm361, %v777
    %s780 = scalar_lea.vmem [#allocation3], 4
    %v781 = vld [vmem:[%s780] ss:$8 sm:$0x3]
    %v782 = vld [vmem:[%s3] sm:$0xff]
    %v783 = vld [vmem:[%s3 + $0x8] sm:$0xff]
    %v784 = vld [vmem:[%s3 + $0x10] sm:$0xff]
    %v785 = vld [vmem:[%s3 + $0x18] sm:$0xff]
    %v786 = vld [vmem:[%s3 + $0x20] sm:$0xff]
    %v787 = vld [vmem:[%s3 + $0x28] sm:$0xff]
    %v788 = vld [vmem:[%s3 + $0x30] sm:$0xff]
    %v789 = vld [vmem:[%s3 + $0x38] sm:$0xff]
    %v790 = vld [vmem:[%s3 + $0x40] sm:$0xff]
    %v791 = vld [vmem:[%s3 + $0x48] sm:$0xff]
    %v792 = vld [vmem:[%s3 + $0x50] sm:$0xff]
    %v793 = vld [vmem:[%s3 + $0x58] sm:$0xff]
    %v794 = vld [vmem:[%s3 + $0x60] sm:$0xff]
    %v795 = vld [vmem:[%s3 + $0x68] sm:$0xff]
    %v796 = vld [vmem:[%s3 + $0x70] sm:$0xff]
    %v797 = vld [vmem:[%s3 + $0x78] sm:$0xff]
    %v799 = vsel %vm239, %v777, 0
    %801 = vmatprep.subr.mxu0 %v783
    %802 = vmatpush1.msra.mxu0 %v782
    %803 = vmatprep.subr.mxu0 %v785
    %804 = vmatpush1.msra.mxu0 %v784
    %805 = vmatprep.subr.mxu0 %v787
    %806 = vmatpush1.msra.mxu0 %v786
    %807 = vmatprep.subr.mxu0 %v789
    %808 = vmatpush1.msra.mxu0 %v788
    %809 = vmatprep.subr.mxu0 %v791
    %810 = vmatpush1.msra.mxu0 %v790
    %811 = vmatprep.subr.mxu0 %v793
    %812 = vmatpush1.msra.mxu0 %v792
    %813 = vmatprep.subr.mxu0 %v795
    %814 = vmatpush1.msra.mxu0 %v794
    %815 = vmatprep.subr.mxu0 %v797
    %816 = vmatpush1.msra.mxu0 %v796
    %817 = vmatprep.subr.mxu0 0.0
    %818 = vmatpush1.msra.mxu0 0.0
    %819 = vmatprep.subr.mxu0 0.0
    %820 = vmatpush1.msra.mxu0 0.0
    %821 = vmatprep.subr.mxu0 0.0
    %822 = vmatpush1.msra.mxu0 0.0
    %823 = vmatprep.subr.mxu0 0.0
    %824 = vmatpush1.msra.mxu0 0.0
    %825 = vmatprep.subr.mxu0 0.0
    %826 = vmatpush1.msra.mxu0 0.0
    %827 = vmatprep.subr.mxu0 0.0
    %828 = vmatpush1.msra.mxu0 0.0
    %829 = vmatprep.subr.mxu0 0.0
    %830 = vmatpush1.msra.mxu0 0.0
    %831 = vmatprep.subr.mxu0 0.0
    %832 = vmatpush1.msra.mxu0 0.0
    %833 = vmatprep.subr.mxu0 0.0
    %834 = vmatpush1.msra.mxu0 0.0
    %835 = vmatprep.subr.mxu0 0.0
    %836 = vmatpush1.msra.mxu0 0.0
    %837 = vmatprep.subr.mxu0 0.0
    %838 = vmatpush1.msra.mxu0 0.0
    %839 = vmatprep.subr.mxu0 0.0
    %840 = vmatpush1.msra.mxu0 0.0
    %841 = vmatprep.subr.mxu0 0.0
    %842 = vmatpush1.msra.mxu0 0.0
    %843 = vmatprep.subr.mxu0 0.0
    %844 = vmatpush1.msra.mxu0 0.0
    %845 = vmatprep.subr.mxu0 0.0
    %846 = vmatpush1.msra.mxu0 0.0
    %847 = vmatprep.subr.mxu0 0.0
    %848 = vmatpush1.msra.mxu0 0.0
    %849 = vmatprep.subr.mxu0 0.0
    %850 = vmatpush1.msra.mxu0 0.0
    %851 = vmatprep.subr.mxu0 0.0
    %852 = vmatpush1.msra.mxu0 0.0
    %853 = vmatprep.subr.mxu0 0.0
    %854 = vmatpush1.msra.mxu0 0.0
    %855 = vmatprep.subr.mxu0 0.0
    %856 = vmatpush1.msra.mxu0 0.0
    %857 = vmatprep.subr.mxu0 0.0
    %858 = vmatpush1.msra.mxu0 0.0
    %859 = vmatprep.subr.mxu0 0.0
    %860 = vmatpush1.msra.mxu0 0.0
    %861 = vmatprep.subr.mxu0 0.0
    %862 = vmatpush1.msra.mxu0 0.0
    %863 = vmatprep.subr.mxu0 0.0
    %864 = vmatpush1.msra.mxu0 0.0
    %865 = vmatprep.mubr.f32.mxu0 0.0
    %866 = vmatmul.mubr.f32.gmra.mrb[0].mxu0 %v799
    %v867 = vpop.f32.mrb[0].mxu0
    %v868 = vadd.f32 0.0, %v867
    %v869 = vpop.f32.mrb[0].mxu0
    %v870 = vadd.f32 0.0, %v869
    %871 = vdwg.mxu0
    %v874 = vcombine.low %v868, %v870
    %v876 = vunpack.c.l.s4 1966171168
    %v877 = vunpack.c.0.s8 %v876
    %v878 = vlaneseq
    %v879 = vshrl.u32 %v878, 7
    %v880 = vsub.s32 %v877, %v879
    %v881 = vrot.slane %v874, %v880
    %v883 = vunpack.c.l.s4 1966171168
    %v884 = vunpack.c.0.s8 %v883
    %v885 = vlaneseq
    %v886 = vshrl.u32 %v885, 7
    %v887 = vsub.s32 %v884, %v886
    %v888 = vrot.slane %v881, %v887
    %v890 = vadd.f32 %v781, %v888
    %v891 = vmul.f32 %v890, 0.5
    %v892 = vtanh.pop %v891
    %v893 = vadd.f32 %v892, 1.0
    %v894 = vmul.f32 %v893, 0.5
    %896 = vrot.lane.b32.xlu0 %v890, 64
    %v897 = vpop.permute.xlu0 %896
    %v898 = vrot.slane %v897, 1
    %v900 = vtanh.pop %v898
    %v901 = vmul.f32 %v894, %v768
    %v902 = vmul.f32 %v894, %v900
    %904 = vrot.lane.b32.xlu0 %v902, 64
    %v905 = vpop.permute.xlu0 %904
    %v907 = vadd.f32 %v901, %v905
    %v908 = vtanh.pop %v907
    %v910 = vrot.slane %v894, 1
    %913 = vrot.lane.b32.xlu0 %v908, 64
    %v914 = vpop.permute.xlu0 %913
    %v916 = vmul.f32 %v910, %v914
    %917 = vst.msk [vmem:[#allocation7 + $0x4] sm:$0x1] %vm359, %v916
    %918 = vst.msk [vmem:[#allocation7 + $0x3] sm:$0x1] %vm361, %v916
    %s919 = scalar_lea.vmem [#allocation3], 5
    %v920 = vld [vmem:[%s919] ss:$8 sm:$0x3]
    %v921 = vld [vmem:[%s3] sm:$0xff]
    %v922 = vld [vmem:[%s3 + $0x8] sm:$0xff]
    %v923 = vld [vmem:[%s3 + $0x10] sm:$0xff]
    %v924 = vld [vmem:[%s3 + $0x18] sm:$0xff]
    %v925 = vld [vmem:[%s3 + $0x20] sm:$0xff]
    %v926 = vld [vmem:[%s3 + $0x28] sm:$0xff]
    %v927 = vld [vmem:[%s3 + $0x30] sm:$0xff]
    %v928 = vld [vmem:[%s3 + $0x38] sm:$0xff]
    %v929 = vld [vmem:[%s3 + $0x40] sm:$0xff]
    %v930 = vld [vmem:[%s3 + $0x48] sm:$0xff]
    %v931 = vld [vmem:[%s3 + $0x50] sm:$0xff]
    %v932 = vld [vmem:[%s3 + $0x58] sm:$0xff]
    %v933 = vld [vmem:[%s3 + $0x60] sm:$0xff]
    %v934 = vld [vmem:[%s3 + $0x68] sm:$0xff]
    %v935 = vld [vmem:[%s3 + $0x70] sm:$0xff]
    %v936 = vld [vmem:[%s3 + $0x78] sm:$0xff]
    %v938 = vsel %vm239, %v916, 0
    %940 = vmatprep.subr.mxu0 %v922
    %941 = vmatpush1.msra.mxu0 %v921
    %942 = vmatprep.subr.mxu0 %v924
    %943 = vmatpush1.msra.mxu0 %v923
    %944 = vmatprep.subr.mxu0 %v926
    %945 = vmatpush1.msra.mxu0 %v925
    %946 = vmatprep.subr.mxu0 %v928
    %947 = vmatpush1.msra.mxu0 %v927
    %948 = vmatprep.subr.mxu0 %v930
    %949 = vmatpush1.msra.mxu0 %v929
    %950 = vmatprep.subr.mxu0 %v932
    %951 = vmatpush1.msra.mxu0 %v931
    %952 = vmatprep.subr.mxu0 %v934
    %953 = vmatpush1.msra.mxu0 %v933
    %954 = vmatprep.subr.mxu0 %v936
    %955 = vmatpush1.msra.mxu0 %v935
    %956 = vmatprep.subr.mxu0 0.0
    %957 = vmatpush1.msra.mxu0 0.0
    %958 = vmatprep.subr.mxu0 0.0
    %959 = vmatpush1.msra.mxu0 0.0
    %960 = vmatprep.subr.mxu0 0.0
    %961 = vmatpush1.msra.mxu0 0.0
    %962 = vmatprep.subr.mxu0 0.0
    %963 = vmatpush1.msra.mxu0 0.0
    %964 = vmatprep.subr.mxu0 0.0
    %965 = vmatpush1.msra.mxu0 0.0
    %966 = vmatprep.subr.mxu0 0.0
    %967 = vmatpush1.msra.mxu0 0.0
    %968 = vmatprep.subr.mxu0 0.0
    %969 = vmatpush1.msra.mxu0 0.0
    %970 = vmatprep.subr.mxu0 0.0
    %971 = vmatpush1.msra.mxu0 0.0
    %972 = vmatprep.subr.mxu0 0.0
    %973 = vmatpush1.msra.mxu0 0.0
    %974 = vmatprep.subr.mxu0 0.0
    %975 = vmatpush1.msra.mxu0 0.0
    %976 = vmatprep.subr.mxu0 0.0
    %977 = vmatpush1.msra.mxu0 0.0
    %978 = vmatprep.subr.mxu0 0.0
    %979 = vmatpush1.msra.mxu0 0.0
    %980 = vmatprep.subr.mxu0 0.0
    %981 = vmatpush1.msra.mxu0 0.0
    %982 = vmatprep.subr.mxu0 0.0
    %983 = vmatpush1.msra.mxu0 0.0
    %984 = vmatprep.subr.mxu0 0.0
    %985 = vmatpush1.msra.mxu0 0.0
    %986 = vmatprep.subr.mxu0 0.0
    %987 = vmatpush1.msra.mxu0 0.0
    %988 = vmatprep.subr.mxu0 0.0
    %989 = vmatpush1.msra.mxu0 0.0
    %990 = vmatprep.subr.mxu0 0.0
    %991 = vmatpush1.msra.mxu0 0.0
    %992 = vmatprep.subr.mxu0 0.0
    %993 = vmatpush1.msra.mxu0 0.0
    %994 = vmatprep.subr.mxu0 0.0
    %995 = vmatpush1.msra.mxu0 0.0
    %996 = vmatprep.subr.mxu0 0.0
    %997 = vmatpush1.msra.mxu0 0.0
    %998 = vmatprep.subr.mxu0 0.0
    %999 = vmatpush1.msra.mxu0 0.0
    %1000 = vmatprep.subr.mxu0 0.0
    %1001 = vmatpush1.msra.mxu0 0.0
    %1002 = vmatprep.subr.mxu0 0.0
    %1003 = vmatpush1.msra.mxu0 0.0
    %1004 = vmatprep.mubr.f32.mxu0 0.0
    %1005 = vmatmul.mubr.f32.gmra.mrb[0].mxu0 %v938
    %v1006 = vpop.f32.mrb[0].mxu0
    %v1007 = vadd.f32 0.0, %v1006
    %v1008 = vpop.f32.mrb[0].mxu0
    %v1009 = vadd.f32 0.0, %v1008
    %1010 = vdwg.mxu0
    %v1013 = vcombine.low %v1007, %v1009
    %v1015 = vunpack.c.l.s4 1966171168
    %v1016 = vunpack.c.0.s8 %v1015
    %v1017 = vlaneseq
    %v1018 = vshrl.u32 %v1017, 7
    %v1019 = vsub.s32 %v1016, %v1018
    %v1020 = vrot.slane %v1013, %v1019
    %v1022 = vunpack.c.l.s4 1966171168
    %v1023 = vunpack.c.0.s8 %v1022
    %v1024 = vlaneseq
    %v1025 = vshrl.u32 %v1024, 7
    %v1026 = vsub.s32 %v1023, %v1025
    %v1027 = vrot.slane %v1020, %v1026
    %v1029 = vadd.f32 %v920, %v1027
    %v1030 = vmul.f32 %v1029, 0.5
    %v1031 = vtanh.pop %v1030
    %v1032 = vadd.f32 %v1031, 1.0
    %v1033 = vmul.f32 %v1032, 0.5
    %1035 = vrot.lane.b32.xlu0 %v1029, 64
    %v1036 = vpop.permute.xlu0 %1035
    %v1037 = vrot.slane %v1036, 1
    %v1039 = vtanh.pop %v1037
    %v1040 = vmul.f32 %v1033, %v907
    %v1041 = vmul.f32 %v1033, %v1039
    %1043 = vrot.lane.b32.xlu0 %v1041, 64
    %v1044 = vpop.permute.xlu0 %1043
    %v1046 = vadd.f32 %v1040, %v1044
    %v1047 = vtanh.pop %v1046
    %v1049 = vrot.slane %v1033, 1
    %1052 = vrot.lane.b32.xlu0 %v1047, 64
    %v1053 = vpop.permute.xlu0 %1052
    %v1055 = vmul.f32 %v1049, %v1053
    %1056 = vst.msk [vmem:[#allocation7 + $0x5] sm:$0x1] %vm359, %v1055
    %1057 = vst.msk [vmem:[#allocation7 + $0x2] sm:$0x1] %vm361, %v1055
    %s1058 = scalar_lea.vmem [#allocation3], 6
    %v1059 = vld [vmem:[%s1058] ss:$8 sm:$0x3]
    %v1060 = vld [vmem:[%s3] sm:$0xff]
    %v1061 = vld [vmem:[%s3 + $0x8] sm:$0xff]
    %v1062 = vld [vmem:[%s3 + $0x10] sm:$0xff]
    %v1063 = vld [vmem:[%s3 + $0x18] sm:$0xff]
    %v1064 = vld [vmem:[%s3 + $0x20] sm:$0xff]
    %v1065 = vld [vmem:[%s3 + $0x28] sm:$0xff]
    %v1066 = vld [vmem:[%s3 + $0x30] sm:$0xff]
    %v1067 = vld [vmem:[%s3 + $0x38] sm:$0xff]
    %v1068 = vld [vmem:[%s3 + $0x40] sm:$0xff]
    %v1069 = vld [vmem:[%s3 + $0x48] sm:$0xff]
    %v1070 = vld [vmem:[%s3 + $0x50] sm:$0xff]
    %v1071 = vld [vmem:[%s3 + $0x58] sm:$0xff]
    %v1072 = vld [vmem:[%s3 + $0x60] sm:$0xff]
    %v1073 = vld [vmem:[%s3 + $0x68] sm:$0xff]
    %v1074 = vld [vmem:[%s3 + $0x70] sm:$0xff]
    %v1075 = vld [vmem:[%s3 + $0x78] sm:$0xff]
    %v1077 = vsel %vm239, %v1055, 0
    %1079 = vmatprep.subr.mxu0 %v1061
    %1080 = vmatpush1.msra.mxu0 %v1060
    %1081 = vmatprep.subr.mxu0 %v1063
    %1082 = vmatpush1.msra.mxu0 %v1062
    %1083 = vmatprep.subr.mxu0 %v1065
    %1084 = vmatpush1.msra.mxu0 %v1064
    %1085 = vmatprep.subr.mxu0 %v1067
    %1086 = vmatpush1.msra.mxu0 %v1066
    %1087 = vmatprep.subr.mxu0 %v1069
    %1088 = vmatpush1.msra.mxu0 %v1068
    %1089 = vmatprep.subr.mxu0 %v1071
    %1090 = vmatpush1.msra.mxu0 %v1070
    %1091 = vmatprep.subr.mxu0 %v1073
    %1092 = vmatpush1.msra.mxu0 %v1072
    %1093 = vmatprep.subr.mxu0 %v1075
    %1094 = vmatpush1.msra.mxu0 %v1074
    %1095 = vmatprep.subr.mxu0 0.0
    %1096 = vmatpush1.msra.mxu0 0.0
    %1097 = vmatprep.subr.mxu0 0.0
    %1098 = vmatpush1.msra.mxu0 0.0
    %1099 = vmatprep.subr.mxu0 0.0
    %1100 = vmatpush1.msra.mxu0 0.0
    %1101 = vmatprep.subr.mxu0 0.0
    %1102 = vmatpush1.msra.mxu0 0.0
    %1103 = vmatprep.subr.mxu0 0.0
    %1104 = vmatpush1.msra.mxu0 0.0
    %1105 = vmatprep.subr.mxu0 0.0
    %1106 = vmatpush1.msra.mxu0 0.0
    %1107 = vmatprep.subr.mxu0 0.0
    %1108 = vmatpush1.msra.mxu0 0.0
    %1109 = vmatprep.subr.mxu0 0.0
    %1110 = vmatpush1.msra.mxu0 0.0
    %1111 = vmatprep.subr.mxu0 0.0
    %1112 = vmatpush1.msra.mxu0 0.0
    %1113 = vmatprep.subr.mxu0 0.0
    %1114 = vmatpush1.msra.mxu0 0.0
    %1115 = vmatprep.subr.mxu0 0.0
    %1116 = vmatpush1.msra.mxu0 0.0
    %1117 = vmatprep.subr.mxu0 0.0
    %1118 = vmatpush1.msra.mxu0 0.0
    %1119 = vmatprep.subr.mxu0 0.0
    %1120 = vmatpush1.msra.mxu0 0.0
    %1121 = vmatprep.subr.mxu0 0.0
    %1122 = vmatpush1.msra.mxu0 0.0
    %1123 = vmatprep.subr.mxu0 0.0
    %1124 = vmatpush1.msra.mxu0 0.0
    %1125 = vmatprep.subr.mxu0 0.0
    %1126 = vmatpush1.msra.mxu0 0.0
    %1127 = vmatprep.subr.mxu0 0.0
    %1128 = vmatpush1.msra.mxu0 0.0
    %1129 = vmatprep.subr.mxu0 0.0
    %1130 = vmatpush1.msra.mxu0 0.0
    %1131 = vmatprep.subr.mxu0 0.0
    %1132 = vmatpush1.msra.mxu0 0.0
    %1133 = vmatprep.subr.mxu0 0.0
    %1134 = vmatpush1.msra.mxu0 0.0
    %1135 = vmatprep.subr.mxu0 0.0
    %1136 = vmatpush1.msra.mxu0 0.0
    %1137 = vmatprep.subr.mxu0 0.0
    %1138 = vmatpush1.msra.mxu0 0.0
    %1139 = vmatprep.subr.mxu0 0.0
    %1140 = vmatpush1.msra.mxu0 0.0
    %1141 = vmatprep.subr.mxu0 0.0
    %1142 = vmatpush1.msra.mxu0 0.0
    %1143 = vmatprep.mubr.f32.mxu0 0.0
    %1144 = vmatmul.mubr.f32.gmra.mrb[0].mxu0 %v1077
    %v1145 = vpop.f32.mrb[0].mxu0
    %v1146 = vadd.f32 0.0, %v1145
    %v1147 = vpop.f32.mrb[0].mxu0
    %v1148 = vadd.f32 0.0, %v1147
    %1149 = vdwg.mxu0
    %v1152 = vcombine.low %v1146, %v1148
    %v1154 = vunpack.c.l.s4 1966171168
    %v1155 = vunpack.c.0.s8 %v1154
    %v1156 = vlaneseq
    %v1157 = vshrl.u32 %v1156, 7
    %v1158 = vsub.s32 %v1155, %v1157
    %v1159 = vrot.slane %v1152, %v1158
    %v1161 = vunpack.c.l.s4 1966171168
    %v1162 = vunpack.c.0.s8 %v1161
    %v1163 = vlaneseq
    %v1164 = vshrl.u32 %v1163, 7
    %v1165 = vsub.s32 %v1162, %v1164
    %v1166 = vrot.slane %v1159, %v1165
    %v1168 = vadd.f32 %v1059, %v1166
    %v1169 = vmul.f32 %v1168, 0.5
    %v1170 = vtanh.pop %v1169
    %v1171 = vadd.f32 %v1170, 1.0
    %v1172 = vmul.f32 %v1171, 0.5
    %1174 = vrot.lane.b32.xlu0 %v1168, 64
    %v1175 = vpop.permute.xlu0 %1174
    %v1176 = vrot.slane %v1175, 1
    %v1178 = vtanh.pop %v1176
    %v1179 = vmul.f32 %v1172, %v1046
    %v1180 = vmul.f32 %v1172, %v1178
    %1182 = vrot.lane.b32.xlu0 %v1180, 64
    %v1183 = vpop.permute.xlu0 %1182
    %v1185 = vadd.f32 %v1179, %v1183
    %v1186 = vtanh.pop %v1185
    %v1188 = vrot.slane %v1172, 1
    %1191 = vrot.lane.b32.xlu0 %v1186, 64
    %v1192 = vpop.permute.xlu0 %1191
    %v1194 = vmul.f32 %v1188, %v1192
    %1195 = vst.msk [vmem:[#allocation7 + $0x6] sm:$0x1] %vm359, %v1194
    %1196 = vst.msk [vmem:[#allocation7 + $0x1] sm:$0x1] %vm361, %v1194
    %s1197 = scalar_lea.vmem [#allocation3], 7
    %v1198 = vld [vmem:[%s1197] ss:$8 sm:$0x3]
    %v1199 = vld [vmem:[%s3] sm:$0xff]
    %v1200 = vld [vmem:[%s3 + $0x8] sm:$0xff]
    %v1201 = vld [vmem:[%s3 + $0x10] sm:$0xff]
    %v1202 = vld [vmem:[%s3 + $0x18] sm:$0xff]
    %v1203 = vld [vmem:[%s3 + $0x20] sm:$0xff]
    %v1204 = vld [vmem:[%s3 + $0x28] sm:$0xff]
    %v1205 = vld [vmem:[%s3 + $0x30] sm:$0xff]
    %v1206 = vld [vmem:[%s3 + $0x38] sm:$0xff]
    %v1207 = vld [vmem:[%s3 + $0x40] sm:$0xff]
    %v1208 = vld [vmem:[%s3 + $0x48] sm:$0xff]
    %v1209 = vld [vmem:[%s3 + $0x50] sm:$0xff]
    %v1210 = vld [vmem:[%s3 + $0x58] sm:$0xff]
    %v1211 = vld [vmem:[%s3 + $0x60] sm:$0xff]
    %v1212 = vld [vmem:[%s3 + $0x68] sm:$0xff]
    %v1213 = vld [vmem:[%s3 + $0x70] sm:$0xff]
    %v1214 = vld [vmem:[%s3 + $0x78] sm:$0xff]
    %v1216 = vsel %vm239, %v1194, 0
    %1218 = vmatprep.subr.mxu0 %v1200
    %1219 = vmatpush1.msra.mxu0 %v1199
    %1220 = vmatprep.subr.mxu0 %v1202
    %1221 = vmatpush1.msra.mxu0 %v1201
    %1222 = vmatprep.subr.mxu0 %v1204
    %1223 = vmatpush1.msra.mxu0 %v1203
    %1224 = vmatprep.subr.mxu0 %v1206
    %1225 = vmatpush1.msra.mxu0 %v1205
    %1226 = vmatprep.subr.mxu0 %v1208
    %1227 = vmatpush1.msra.mxu0 %v1207
    %1228 = vmatprep.subr.mxu0 %v1210
    %1229 = vmatpush1.msra.mxu0 %v1209
    %1230 = vmatprep.subr.mxu0 %v1212
    %1231 = vmatpush1.msra.mxu0 %v1211
    %1232 = vmatprep.subr.mxu0 %v1214
    %1233 = vmatpush1.msra.mxu0 %v1213
    %1234 = vmatprep.subr.mxu0 0.0
    %1235 = vmatpush1.msra.mxu0 0.0
    %1236 = vmatprep.subr.mxu0 0.0
    %1237 = vmatpush1.msra.mxu0 0.0
    %1238 = vmatprep.subr.mxu0 0.0
    %1239 = vmatpush1.msra.mxu0 0.0
    %1240 = vmatprep.subr.mxu0 0.0
    %1241 = vmatpush1.msra.mxu0 0.0
    %1242 = vmatprep.subr.mxu0 0.0
    %1243 = vmatpush1.msra.mxu0 0.0
    %1244 = vmatprep.subr.mxu0 0.0
    %1245 = vmatpush1.msra.mxu0 0.0
    %1246 = vmatprep.subr.mxu0 0.0
    %1247 = vmatpush1.msra.mxu0 0.0
    %1248 = vmatprep.subr.mxu0 0.0
    %1249 = vmatpush1.msra.mxu0 0.0
    %1250 = vmatprep.subr.mxu0 0.0
    %1251 = vmatpush1.msra.mxu0 0.0
    %1252 = vmatprep.subr.mxu0 0.0
    %1253 = vmatpush1.msra.mxu0 0.0
    %1254 = vmatprep.subr.mxu0 0.0
    %1255 = vmatpush1.msra.mxu0 0.0
    %1256 = vmatprep.subr.mxu0 0.0
    %1257 = vmatpush1.msra.mxu0 0.0
    %1258 = vmatprep.subr.mxu0 0.0
    %1259 = vmatpush1.msra.mxu0 0.0
    %1260 = vmatprep.subr.mxu0 0.0
    %1261 = vmatpush1.msra.mxu0 0.0
    %1262 = vmatprep.subr.mxu0 0.0
    %1263 = vmatpush1.msra.mxu0 0.0
    %1264 = vmatprep.subr.mxu0 0.0
    %1265 = vmatpush1.msra.mxu0 0.0
    %1266 = vmatprep.subr.mxu0 0.0
    %1267 = vmatpush1.msra.mxu0 0.0
    %1268 = vmatprep.subr.mxu0 0.0
    %1269 = vmatpush1.msra.mxu0 0.0
    %1270 = vmatprep.subr.mxu0 0.0
    %1271 = vmatpush1.msra.mxu0 0.0
    %1272 = vmatprep.subr.mxu0 0.0
    %1273 = vmatpush1.msra.mxu0 0.0
    %1274 = vmatprep.subr.mxu0 0.0
    %1275 = vmatpush1.msra.mxu0 0.0
    %1276 = vmatprep.subr.mxu0 0.0
    %1277 = vmatpush1.msra.mxu0 0.0
    %1278 = vmatprep.subr.mxu0 0.0
    %1279 = vmatpush1.msra.mxu0 0.0
    %1280 = vmatprep.subr.mxu0 0.0
    %1281 = vmatpush1.msra.mxu0 0.0
    %1282 = vmatprep.mubr.f32.mxu0 0.0
    %1283 = vmatmul.mubr.f32.gmra.mrb[0].mxu0 %v1216
    %v1284 = vpop.f32.mrb[0].mxu0
    %v1285 = vadd.f32 0.0, %v1284
    %v1286 = vpop.f32.mrb[0].mxu0
    %v1287 = vadd.f32 0.0, %v1286
    %1288 = vdwg.mxu0
    %v1291 = vcombine.low %v1285, %v1287
    %v1293 = vunpack.c.l.s4 1966171168
    %v1294 = vunpack.c.0.s8 %v1293
    %v1295 = vlaneseq
    %v1296 = vshrl.u32 %v1295, 7
    %v1297 = vsub.s32 %v1294, %v1296
    %v1298 = vrot.slane %v1291, %v1297
    %v1300 = vunpack.c.l.s4 1966171168
    %v1301 = vunpack.c.0.s8 %v1300
    %v1302 = vlaneseq
    %v1303 = vshrl.u32 %v1302, 7
    %v1304 = vsub.s32 %v1301, %v1303
    %v1305 = vrot.slane %v1298, %v1304
    %v1307 = vadd.f32 %v1198, %v1305
    %v1308 = vmul.f32 %v1307, 0.5
    %v1309 = vtanh.pop %v1308
    %v1310 = vadd.f32 %v1309, 1.0
    %v1311 = vmul.f32 %v1310, 0.5
    %1313 = vrot.lane.b32.xlu0 %v1307, 64
    %v1314 = vpop.permute.xlu0 %1313
    %v1315 = vrot.slane %v1314, 1
    %v1317 = vtanh.pop %v1315
    %v1318 = vmul.f32 %v1311, %v1185
    %v1319 = vmul.f32 %v1311, %v1317
    %1321 = vrot.lane.b32.xlu0 %v1319, 64
    %v1322 = vpop.permute.xlu0 %1321
    %v1324 = vadd.f32 %v1318, %v1322
    %v1325 = vtanh.pop %v1324
    %v1327 = vrot.slane %v1311, 1
    %1330 = vrot.lane.b32.xlu0 %v1325, 64
    %v1331 = vpop.permute.xlu0 %1330
    %v1333 = vmul.f32 %v1327, %v1331
    %1334 = vst.msk [vmem:[#allocation7 + $0x7] sm:$0x1] %vm359, %v1333
    %1335 = vst.msk [vmem:[#allocation7] sm:$0x1] %vm361, %v1333
    %v1336 = vld [vmem:[#allocation7 + $0x7] sm:$0x1]
    %v1337 = vld [vmem:[%s5] sm:$0xff]
    %v1338 = vld [vmem:[%s5 + $0x8] sm:$0xff]
    %v1339 = vld [vmem:[%s5 + $0x10] sm:$0xff]
    %v1340 = vld [vmem:[%s5 + $0x18] sm:$0xff]
    %v1341 = vld [vmem:[%s5 + $0x20] sm:$0xff]
    %v1342 = vld [vmem:[%s5 + $0x28] sm:$0xff]
    %v1343 = vld [vmem:[%s5 + $0x30] sm:$0xff]
    %v1344 = vld [vmem:[%s5 + $0x38] sm:$0xff]
    %v1345 = vld [vmem:[%s6] sm:$0x1]
    %v1347 = vsel %vm239, %v1336, 0
    %1349 = vmatprep.subr.mxu0 0.0
    %1350 = vmatpush1.msra.mxu0 %v1337
    %1351 = vmatprep.subr.mxu0 0.0
    %1352 = vmatpush1.msra.mxu0 %v1338
    %1353 = vmatprep.subr.mxu0 0.0
    %1354 = vmatpush1.msra.mxu0 %v1339
    %1355 = vmatprep.subr.mxu0 0.0
    %1356 = vmatpush1.msra.mxu0 %v1340
    %1357 = vmatprep.subr.mxu0 0.0
    %1358 = vmatpush1.msra.mxu0 %v1341
    %1359 = vmatprep.subr.mxu0 0.0
    %1360 = vmatpush1.msra.mxu0 %v1342
    %1361 = vmatprep.subr.mxu0 0.0
    %1362 = vmatpush1.msra.mxu0 %v1343
    %1363 = vmatprep.subr.mxu0 0.0
    %1364 = vmatpush1.msra.mxu0 %v1344
    %1365 = vmatprep.subr.mxu0 0.0
    %1366 = vmatpush1.msra.mxu0 0.0
    %1367 = vmatprep.subr.mxu0 0.0
    %1368 = vmatpush1.msra.mxu0 0.0
    %1369 = vmatprep.subr.mxu0 0.0
    %1370 = vmatpush1.msra.mxu0 0.0
    %1371 = vmatprep.subr.mxu0 0.0
    %1372 = vmatpush1.msra.mxu0 0.0
    %1373 = vmatprep.subr.mxu0 0.0
    %1374 = vmatpush1.msra.mxu0 0.0
    %1375 = vmatprep.subr.mxu0 0.0
    %1376 = vmatpush1.msra.mxu0 0.0
    %1377 = vmatprep.subr.mxu0 0.0
    %1378 = vmatpush1.msra.mxu0 0.0
    %1379 = vmatprep.subr.mxu0 0.0
    %1380 = vmatpush1.msra.mxu0 0.0
    %1381 = vmatprep.subr.mxu0 0.0
    %1382 = vmatpush1.msra.mxu0 0.0
    %1383 = vmatprep.subr.mxu0 0.0
    %1384 = vmatpush1.msra.mxu0 0.0
    %1385 = vmatprep.subr.mxu0 0.0
    %1386 = vmatpush1.msra.mxu0 0.0
    %1387 = vmatprep.subr.mxu0 0.0
    %1388 = vmatpush1.msra.mxu0 0.0
    %1389 = vmatprep.subr.mxu0 0.0
    %1390 = vmatpush1.msra.mxu0 0.0
    %1391 = vmatprep.subr.mxu0 0.0
    %1392 = vmatpush1.msra.mxu0 0.0
    %1393 = vmatprep.subr.mxu0 0.0
    %1394 = vmatpush1.msra.mxu0 0.0
    %1395 = vmatprep.subr.mxu0 0.0
    %1396 = vmatpush1.msra.mxu0 0.0
    %1397 = vmatprep.subr.mxu0 0.0
    %1398 = vmatpush1.msra.mxu0 0.0
    %1399 = vmatprep.subr.mxu0 0.0
    %1400 = vmatpush1.msra.mxu0 0.0
    %1401 = vmatprep.subr.mxu0 0.0
    %1402 = vmatpush1.msra.mxu0 0.0
    %1403 = vmatprep.subr.mxu0 0.0
    %1404 = vmatpush1.msra.mxu0 0.0
    %1405 = vmatprep.subr.mxu0 0.0
    %1406 = vmatpush1.msra.mxu0 0.0
    %1407 = vmatprep.subr.mxu0 0.0
    %1408 = vmatpush1.msra.mxu0 0.0
    %1409 = vmatprep.subr.mxu0 0.0
    %1410 = vmatpush1.msra.mxu0 0.0
    %1411 = vmatprep.subr.mxu0 0.0
    %1412 = vmatpush1.msra.mxu0 0.0
    %1413 = vmatprep.mubr.f32.mxu0 0.0
    %1414 = vmatmul.mubr.f32.gmra.mrb[0].mxu0 %v1347
    %v1415 = vpop.f32.mrb[0].mxu0
    %v1416 = vadd.f32 %v1345, %v1415
    %v1417 = vpop.f32.mrb[0].mxu0
    %1418 = vdwg.mxu0
    %1419 = vst.msk [vmem:[#allocation8] sm:$0x1] %vm359, %v1416
    %v1420 = vld [vmem:[%s7] sm:$0xff]
    %v1421 = vld [vmem:[%s7 + $0x8] sm:$0xff]
    %v1422 = vld [vmem:[%s7 + $0x10] sm:$0xff]
    %v1423 = vld [vmem:[%s7 + $0x18] sm:$0xff]
    %v1424 = vld [vmem:[%s7 + $0x20] sm:$0xff]
    %v1425 = vld [vmem:[%s7 + $0x28] sm:$0xff]
    %v1426 = vld [vmem:[%s7 + $0x30] sm:$0xff]
    %v1427 = vld [vmem:[%s7 + $0x38] sm:$0xff]
    %v1428 = vld [vmem:[%s8] sm:$0x1]
    %v1430 = vlaneseq
    %v1431 = vshrl.u32 %v1430, 7
    %v1432 = vsub.s32 0, %v1431
    %v1433 = vrot.slane %v1324, %v1432
    %1434 = vrot.lane.b32.xlu0 %v1433, 64
    %v1435 = vpop.permute.xlu0 %1434
    %v1436 = vsel %vm239, %v1435, 0
    %1438 = vmatprep.subr.mxu0 0.0
    %1439 = vmatpush1.msra.mxu0 %v1420
    %1440 = vmatprep.subr.mxu0 0.0
    %1441 = vmatpush1.msra.mxu0 %v1421
    %1442 = vmatprep.subr.mxu0 0.0
    %1443 = vmatpush1.msra.mxu0 %v1422
    %1444 = vmatprep.subr.mxu0 0.0
    %1445 = vmatpush1.msra.mxu0 %v1423
    %1446 = vmatprep.subr.mxu0 0.0
    %1447 = vmatpush1.msra.mxu0 %v1424
    %1448 = vmatprep.subr.mxu0 0.0
    %1449 = vmatpush1.msra.mxu0 %v1425
    %1450 = vmatprep.subr.mxu0 0.0
    %1451 = vmatpush1.msra.mxu0 %v1426
    %1452 = vmatprep.subr.mxu0 0.0
    %1453 = vmatpush1.msra.mxu0 %v1427
    %1454 = vmatprep.subr.mxu0 0.0
    %1455 = vmatpush1.msra.mxu0 0.0
    %1456 = vmatprep.subr.mxu0 0.0
    %1457 = vmatpush1.msra.mxu0 0.0
    %1458 = vmatprep.subr.mxu0 0.0
    %1459 = vmatpush1.msra.mxu0 0.0
    %1460 = vmatprep.subr.mxu0 0.0
    %1461 = vmatpush1.msra.mxu0 0.0
    %1462 = vmatprep.subr.mxu0 0.0
    %1463 = vmatpush1.msra.mxu0 0.0
    %1464 = vmatprep.subr.mxu0 0.0
    %1465 = vmatpush1.msra.mxu0 0.0
    %1466 = vmatprep.subr.mxu0 0.0
    %1467 = vmatpush1.msra.mxu0 0.0
    %1468 = vmatprep.subr.mxu0 0.0
    %1469 = vmatpush1.msra.mxu0 0.0
    %1470 = vmatprep.subr.mxu0 0.0
    %1471 = vmatpush1.msra.mxu0 0.0
    %1472 = vmatprep.subr.mxu0 0.0
    %1473 = vmatpush1.msra.mxu0 0.0
    %1474 = vmatprep.subr.mxu0 0.0
    %1475 = vmatpush1.msra.mxu0 0.0
    %1476 = vmatprep.subr.mxu0 0.0
    %1477 = vmatpush1.msra.mxu0 0.0
    %1478 = vmatprep.subr.mxu0 0.0
    %1479 = vmatpush1.msra.mxu0 0.0
    %1480 = vmatprep.subr.mxu0 0.0
    %1481 = vmatpush1.msra.mxu0 0.0
    %1482 = vmatprep.subr.mxu0 0.0
    %1483 = vmatpush1.msra.mxu0 0.0
    %1484 = vmatprep.subr.mxu0 0.0
    %1485 = vmatpush1.msra.mxu0 0.0
    %1486 = vmatprep.subr.mxu0 0.0
    %1487 = vmatpush1.msra.mxu0 0.0
    %1488 = vmatprep.subr.mxu0 0.0
    %1489 = vmatpush1.msra.mxu0 0.0
    %1490 = vmatprep.subr.mxu0 0.0
    %1491 = vmatpush1.msra.mxu0 0.0
    %1492 = vmatprep.subr.mxu0 0.0
    %1493 = vmatpush1.msra.mxu0 0.0
    %1494 = vmatprep.subr.mxu0 0.0
    %1495 = vmatpush1.msra.mxu0 0.0
    %1496 = vmatprep.subr.mxu0 0.0
    %1497 = vmatpush1.msra.mxu0 0.0
    %1498 = vmatprep.subr.mxu0 0.0
    %1499 = vmatpush1.msra.mxu0 0.0
    %1500 = vmatprep.subr.mxu0 0.0
    %1501 = vmatpush1.msra.mxu0 0.0
    %1502 = vmatprep.mubr.f32.mxu0 0.0
    %1503 = vmatmul.mubr.f32.gmra.mrb[0].mxu0 %v1436
    %v1504 = vpop.f32.mrb[0].mxu0
    %v1505 = vadd.f32 %v1428, %v1504
    %v1506 = vpop.f32.mrb[0].mxu0
    %1507 = vdwg.mxu0
    %1508 = vst.msk [vmem:[#allocation10] sm:$0x1] %vm359, %v1505
    // Predicated region
    $region42: #{encoder_rnn_forward.1} parent=1 // pred_check
      _
    $region43: #{encoder_rnn_forward.1} parent=1 // pred_check_branch
      %1510 = sbr.rel (0) target = $region45
    $region44: #{encoder_rnn_forward.1} parent=1 // pred_region
      %s1512 = ssub.s32 128, 128
      %1513 = vsyncadd [#allocation5], %s1512
      %s1515 = sshll.u32 [#allocation7], 4
      %s1516 = int_to_ptr.vmem [resolvable:$true] %s1515
      %1518 = dma.vmem_to_hbm [thread:$0]  %s1516, 128, %s9, [#allocation5]
    $region45: #{encoder_rnn_forward.1} parent=1 // pred_fallthru
      _
    // Predicated region
    $region46: #{encoder_rnn_forward.1} parent=1 // pred_check
      _
    $region47: #{encoder_rnn_forward.1} parent=1 // pred_check_branch
      %1520 = sbr.rel (0) target = $region49
    $region48: #{encoder_rnn_forward.1} parent=1 // pred_region
      %s1522 = ssub.s32 16, 16
      %1523 = vsyncadd [#allocation9], %s1522
      %s1525 = sshll.u32 [#allocation8], 4
      %s1526 = int_to_ptr.vmem [resolvable:$true] %s1525
      %1528 = dma.vmem_to_hbm [thread:$0]  %s1526, 16, %s10, [#allocation9]
    $region49: #{encoder_rnn_forward.1} parent=1 // pred_fallthru
      _
    // Predicated region
    $region50: #{encoder_rnn_forward.1} parent=1 // pred_check
      _
    $region51: #{encoder_rnn_forward.1} parent=1 // pred_check_branch
      %1530 = sbr.rel (0) target = $region53
    $region52: #{encoder_rnn_forward.1} parent=1 // pred_region
      %s1532 = ssub.s32 16, 16
      %1533 = vsyncadd [#allocation9], %s1532
      %s1535 = sshll.u32 [#allocation10], 4
      %s1536 = int_to_ptr.vmem [resolvable:$true] %s1535
      %1538 = dma.vmem_to_hbm [thread:$0]  %s1536, 16, %s11, [#allocation9]
    $region53: #{encoder_rnn_forward.1} parent=1 // pred_fallthru
      _
    // Predicated region
    $region54: #{encoder_rnn_forward.1} parent=1 // pred_check
      _
    $region55: #{encoder_rnn_forward.1} parent=1 // pred_check_branch
      %1540 = sbr.rel (0) target = $region57
    $region56: #{encoder_rnn_forward.1} parent=1 // pred_region
      %1541 = dma.done [#allocation5], 128
    $region57: #{encoder_rnn_forward.1} parent=1 // pred_fallthru
      _
    // Predicated region
    $region58: #{encoder_rnn_forward.1} parent=1 // pred_check
      _
    $region59: #{encoder_rnn_forward.1} parent=1 // pred_check_branch
      %1543 = sbr.rel (0) target = $region61
    $region60: #{encoder_rnn_forward.1} parent=1 // pred_region
      %1544 = dma.done [#allocation9], 16
    $region61: #{encoder_rnn_forward.1} parent=1 // pred_fallthru
      _
    // Predicated region
    $region62: #{encoder_rnn_forward.1} parent=1 // pred_check
      _
    $region63: #{encoder_rnn_forward.1} parent=1 // pred_check_branch
      %1546 = sbr.rel (0) target = $region65
    $region64: #{encoder_rnn_forward.1} parent=1 // pred_region
      %1547 = dma.done [#allocation9], 16
    $region65: #{encoder_rnn_forward.1} parent=1 // pred_fallthru
      _
    %1548 = vsyncpa [#allocation5], 1
    %1549 = vsyncpa [#allocation9], 1
    %1550 = vsyncpa [#allocation6], 1

</llo_original>
